<compile_context>
chip_gen: v7x
topology: tpu7x:2x2x1
jax: 0.10.0
libtpu: 0.0.40
codegen_flags: <defaults>
</compile_context>

<pallas_src>
import functools

import jax
import jax.numpy as jnp
from jax.experimental import pallas as pl
from jax.experimental.pallas import tpu as pltpu


# ---------------------------------------------------------------------------
# Parameter preparation (pure functions of the weights; done in the wrapper).
# ---------------------------------------------------------------------------
def _quantize_weight(w):
    """Conv2dQuant forward-time weight quantization (per output channel)."""
    wmax = jnp.max(jnp.abs(w), axis=(1, 2, 3), keepdims=True)
    return jnp.round(w / (wmax + 1e-12) * 127.0) * wmax / 127.0


def _fold_bn(gamma, beta, mean, var, eps=1e-5):
    scale = gamma / jnp.sqrt(var + eps)
    bias = beta - mean * scale
    return scale, bias


def _vmem_limit_bytes():
    """Generation-aware VMEM budget (v5e/v6e: 128 MiB phys, v7x: 64 MiB)."""
    try:
        cap = int(pltpu.get_tpu_info().vmem_capacity_bytes)
    except Exception:  # conservative fallback if the query is unavailable
        cap = 64 * 1024 * 1024
    return int(min(max(cap // 2, 16 * 1024 * 1024), 64 * 1024 * 1024))


def _pick_row_tile(h, w, c, target_bytes=2 << 20):
    """Row-tile height: a divisor of h with ~target_bytes of f32 activation
    per tile, preferring >= 2 row tiles so each v7x TensorCore gets >= 2
    grid steps (DMA/compute overlap per core)."""
    cap = max(1, target_bytes // (4 * (w + 2) * c))
    th = min(h, cap)
    while th > 1 and h % th != 0:
        th -= 1
    if th == h and h % 2 == 0 and h >= 8:
        th = h // 2
    return th


def _hard_quant(y):
    y = jnp.clip(y, 0.0, 4.0)
    return jnp.round(y * (255.0 / 4.0)) * (4.0 / 255.0)


# ---------------------------------------------------------------------------
# Fused kernel: one row tile of mobile_unit_v2 (stride=1, num3x3=1).
# Channels-last; C sits in the 128-lane axis -> lane-dense loads/stores.
# ---------------------------------------------------------------------------
def _mobile_unit_v2_kernel(x_ref, w1_ref, b1_ref, wk_ref, b2_ref, o_ref,
                           pad_ref, *, th, conv_first, fuse_avg):
    """Refs:
      x_ref   : (1, H, W, Cin)    full image (block reused across the r axis)
      w1_ref  : (Cin, Cout)       quantized 1x1 weight, BN scale folded in
      b1_ref  : (1, Cout)         folded BN bias of the 1x1 conv
      wk_ref  : (9, 1, Cdw)       quantized dw 3x3 taps * per-channel BN scale
      b2_ref  : (1, Cdw)          folded BN bias of the dw conv
      o_ref   : (1, th, W, Cout)  output row tile
      pad_ref : (th+2, W+2, Cdw)  VMEM scratch: zero-padded dw-conv input window
    """
    r = pl.program_id(1)
    nrt = pl.num_programs(1)
    _, H, W, Cin = x_ref.shape
    Cout = o_ref.shape[-1]
    Cdw = pad_ref.shape[-1]
    r0 = r * th

    w1 = w1_ref[...]
    b1 = b1_ref[...]

    def conv1x1_hq(xrows):                      # (rows, W, Cin) -> (rows, W, Cout)
        rows = xrows.shape[0]
        y = jnp.dot(xrows.reshape(rows * W, Cin), w1,
                    preferred_element_type=jnp.float32)
        return _hard_quant(y + b1).reshape(rows, W, Cout)

    def dw_input(xrows):                        # what the depthwise 3x3 conv sees
        return conv1x1_hq(xrows) if conv_first else xrows

    # --- build the zero-padded (th+2, W+2, Cdw) window of the dw-conv input.
    # Halo rows of the 1x1 result are recomputed per row tile (2 tiny rows).
    pad_ref[...] = jnp.zeros_like(pad_ref)
    pad_ref[1:th + 1, 1:W + 1, :] = dw_input(x_ref[0, pl.ds(r0, th)])

    @pl.when(r > 0)
    def _top_halo():
        pad_ref[0:1, 1:W + 1, :] = dw_input(x_ref[0, pl.ds(r0 - 1, 1)])

    @pl.when(r < nrt - 1)
    def _bottom_halo():
        pad_ref[th + 1:th + 2, 1:W + 1, :] = dw_input(x_ref[0, pl.ds(r0 + th, 1)])

    # --- depthwise 3x3 + folded-BN bias + HardQuant(0, 4).
    # kw (sublane) shift hoisted out of the tap loop: 3 unaligned slices of the
    # padded window; the per-kh slices are along the tile-major dim (cheap).
    acc = jnp.zeros((th, W, Cdw), jnp.float32)
    for kw in range(3):
        slab = pad_ref[:, kw:kw + W, :]                       # (th+2, W, Cdw)
        for kh in range(3):
            acc = acc + slab[kh:kh + th] * wk_ref[kh * 3 + kw]
    y = _hard_quant(acc + b2_ref[...])

    if conv_first:
        if fuse_avg:                             # AvgQuant((dw_out, residual x))
            y = (y + x_ref[0, pl.ds(r0, th)]) * 0.5
            y = jnp.floor(y * (255.0 / 4.0)) * (4.0 / 255.0)
        o_ref[0] = y.astype(o_ref.dtype)
    else:                                        # channel_in < channel_out path
        o_ref[0] = conv1x1_hq(y).astype(o_ref.dtype)


# ---------------------------------------------------------------------------
# Wrappers.
# ---------------------------------------------------------------------------
def mobile_unit_v2_pallas_nhwc(x_nhwc, w1, bn1, wdw, bn_dw):
    """mobile_unit_v2 forward (stride=1, num3x3=1), NHWC in / NHWC out.
    bn1 / bn_dw are (gamma, beta, running_mean, running_var) tuples."""
    n, h, w, cin = x_nhwc.shape
    cout = w1.shape[0]
    cdw = wdw.shape[0]
    conv_first = not (cin < cout)                # stride == 1 branch selection
    fuse_avg = conv_first and (cin == cout)
    assert cdw == (cin if cin < cout else cout)

    # 1x1 conv: quantize weights + fold BN scale into the weight columns.
    s1, b1 = _fold_bn(*bn1)
    w1q = (_quantize_weight(w1).reshape(cout, cin).T
           * s1.reshape(1, cout)).astype(jnp.float32)
    b1 = b1.reshape(1, cout).astype(jnp.float32)

    # depthwise 3x3: quantize weights + fold BN scale per channel.
    s2, b2 = _fold_bn(*bn_dw)
    wk = (_quantize_weight(wdw).reshape(cdw, 9).T * s2.reshape(1, cdw))
    wk = wk.reshape(9, 1, cdw).astype(jnp.float32)
    b2 = b2.reshape(1, cdw).astype(jnp.float32)

    th = _pick_row_tile(h, w, max(cin, cout))
    nrt = h // th
    kernel = functools.partial(_mobile_unit_v2_kernel, th=th,
                               conv_first=conv_first, fuse_avg=fuse_avg)
    # TODO(synk): for images too large to hold one (H, W, C) slice in VMEM,
    # switch the x BlockSpec to memory_space=pl.ANY + manual halo DMA.
    return pl.pallas_call(
        kernel,
        out_shape=jax.ShapeDtypeStruct((n, h, w, cout), x_nhwc.dtype),
        grid=(n, nrt),
        in_specs=[
            pl.BlockSpec((1, h, w, cin), lambda i, r: (i, 0, 0, 0)),
            pl.BlockSpec((cin, cout), lambda i, r: (0, 0)),
            pl.BlockSpec((1, cout), lambda i, r: (0, 0)),
            pl.BlockSpec((9, 1, cdw), lambda i, r: (0, 0, 0)),
            pl.BlockSpec((1, cdw), lambda i, r: (0, 0)),
        ],
        out_specs=pl.BlockSpec((1, th, w, cout), lambda i, r: (i, r, 0, 0)),
        scratch_shapes=[pltpu.VMEM((th + 2, w + 2, cdw), jnp.float32)],
        compiler_params=pltpu.CompilerParams(
            dimension_semantics=("parallel", "parallel"),
            vmem_limit_bytes=_vmem_limit_bytes(),
        ),
    )(x_nhwc, w1q, b1, wk, b2)


def mobile_unit_v2_pallas(x_nchw, w1, bn1, wdw, bn_dw):
    """NCHW wrapper matching the PyTorch module interface.  When chaining
    several mobile units, call mobile_unit_v2_pallas_nhwc directly and
    transpose only at model boundaries (avoids one full HBM relayout/unit)."""
    x_nhwc = jnp.transpose(x_nchw, (0, 2, 3, 1))
    out = mobile_unit_v2_pallas_nhwc(x_nhwc, w1, bn1, wdw, bn_dw)
    return jnp.transpose(out, (0, 3, 1, 2))


# ---------------------------------------------------------------------------
# Plain-JAX reference (mirrors the PyTorch forward; f32, HIGHEST matmul).
# ---------------------------------------------------------------------------
def mobile_unit_v2_ref(x_nchw, w1, bn1, wdw, bn_dw):
    n, cin, h, w = x_nchw.shape
    cout = w1.shape[0]
    cdw = wdw.shape[0]
    x = jnp.transpose(x_nchw, (0, 2, 3, 1))

    w1q = _quantize_weight(w1).reshape(cout, cin).T
    s1, b1 = _fold_bn(*bn1)
    wk9 = _quantize_weight(wdw).reshape(cdw, 9).T
    s2, b2 = _fold_bn(*bn_dw)

    def conv1x1(hx):
        nn_, hh, ww, cc = hx.shape
        y = jnp.dot(hx.reshape(nn_ * hh * ww, cc), w1q,
                    preferred_element_type=jnp.float32,
                    precision=jax.lax.Precision.HIGHEST)
        y = y * s1.reshape(1, cout) + b1.reshape(1, cout)
        return _hard_quant(y).reshape(nn_, hh, ww, cout)

    def dwconv(hx):
        nn_, hh, ww, cc = hx.shape
        hp = jnp.pad(hx, ((0, 0), (1, 1), (1, 1), (0, 0)))
        acc = jnp.zeros_like(hx)
        for kh in range(3):
            for kw in range(3):
                acc = acc + (hp[:, kh:kh + hh, kw:kw + ww, :]
                             * wk9[kh * 3 + kw].reshape(1, 1, 1, cc))
        y = acc * s2.reshape(1, 1, 1, cc) + b2.reshape(1, 1, 1, cc)
        return _hard_quant(y)

    if cin < cout:
        out = conv1x1(dwconv(x))
    else:
        out = dwconv(conv1x1(x))
        if cin == cout:
            out = (out + x) * 0.5
            out = jnp.floor(out * (255.0 / 4.0)) * (4.0 / 255.0)
    return jnp.transpose(out, (0, 3, 1, 2))


if __name__ == "__main__":
    key = jax.random.PRNGKey(0)
    ks = jax.random.split(key, 10)

    def make_bn(k, c):
        k1, k2, k3, k4 = jax.random.split(k, 4)
        gamma = 1.0 + 0.1 * jax.random.normal(k1, (c,), jnp.float32)
        beta = 0.1 * jax.random.normal(k2, (c,), jnp.float32)
        mean = 0.1 * jax.random.normal(k3, (c,), jnp.float32)
        var = 1.0 + 0.1 * jnp.abs(jax.random.normal(k4, (c,), jnp.float32))
        return gamma, beta, mean, var

    # Config 1: channel_in == channel_out (conv1x1 -> dw3x3 -> AvgQuant residual).
    N, C, H, W = 2, 128, 16, 16
    x = jax.random.normal(ks[0], (N, C, H, W), jnp.float32)
    w1 = 0.1 * jax.random.normal(ks[1], (C, C, 1, 1), jnp.float32)
    wdw = 0.3 * jax.random.normal(ks[2], (C, 1, 3, 3), jnp.float32)
    bn1 = make_bn(ks[3], C)
    bn_dw = make_bn(ks[4], C)

    out = jax.block_until_ready(mobile_unit_v2_pallas(x, w1, bn1, wdw, bn_dw))
    ref = mobile_unit_v2_ref(x, w1, bn1, wdw, bn_dw)
    max_err = float(jnp.max(jnp.abs(out - ref)))
    mean_err = float(jnp.mean(jnp.abs(out - ref)))
    assert max_err < 0.1 and mean_err < 0.02, (max_err, mean_err)

    # Config 2: channel_in < channel_out (dw3x3 -> conv1x1, no residual avg).
    Cin2, Cout2 = 64, 128
    x2 = jax.random.normal(ks[5], (N, Cin2, H, W), jnp.float32)
    w1b = 0.1 * jax.random.normal(ks[6], (Cout2, Cin2, 1, 1), jnp.float32)
    wdwb = 0.3 * jax.random.normal(ks[7], (Cin2, 1, 3, 3), jnp.float32)
    bn1b = make_bn(ks[8], Cout2)
    bn_dwb = make_bn(ks[9], Cin2)

    out2 = jax.block_until_ready(mobile_unit_v2_pallas(x2, w1b, bn1b, wdwb, bn_dwb))
    ref2 = mobile_unit_v2_ref(x2, w1b, bn1b, wdwb, bn_dwb)
    max_err2 = float(jnp.max(jnp.abs(out2 - ref2)))
    mean_err2 = float(jnp.mean(jnp.abs(out2 - ref2)))
    assert max_err2 < 0.1 and mean_err2 < 0.02, (max_err2, mean_err2)

    print("KERNEL_OK")
</pallas_src>

<mosaic_0001>
module attributes {stable_mosaic.version = 11 : i64} {
  func.func @_mobile_unit_v2_kernel(%arg0: i32, %arg1: i32, %arg2: memref<1x16x16x128xf32, #tpu.memory_space<vmem>>, %arg3: memref<128x128xf32, #tpu.memory_space<vmem>>, %arg4: memref<1x128xf32, #tpu.memory_space<vmem>>, %arg5: memref<9x1x128xf32, #tpu.memory_space<vmem>>, %arg6: memref<1x128xf32, #tpu.memory_space<vmem>>, %arg7: memref<1x8x16x128xf32, #tpu.memory_space<vmem>>, %arg8: memref<10x18x128xf32, #tpu.memory_space<vmem>>) attributes {dimension_semantics = [#tpu.dimension_semantics<parallel>, #tpu.dimension_semantics<parallel>], iteration_bounds = array<i64: 2, 2>, scalar_prefetch = 0 : i64, scratch_operands = 1 : i64, tpu.core_type = #tpu.core_type<tc>, window_params = [{transform_indices = @transform_0, window_bounds = array<i64: 1, 16, 16, 128>}, {pipeline_mode = #tpu.pipeline_mode<synchronous>, transform_indices = @transform_1, window_bounds = array<i64: 128, 128>}, {pipeline_mode = #tpu.pipeline_mode<synchronous>, transform_indices = @transform_2, window_bounds = array<i64: 1, 128>}, {pipeline_mode = #tpu.pipeline_mode<synchronous>, transform_indices = @transform_3, window_bounds = array<i64: 9, 1, 128>}, {pipeline_mode = #tpu.pipeline_mode<synchronous>, transform_indices = @transform_4, window_bounds = array<i64: 1, 128>}, {transform_indices = @transform_5, window_bounds = array<i64: 1, 8, 16, 128>}]} {
    %c8_i32 = arith.constant 8 : i32
    %0 = arith.muli %arg1, %c8_i32 : i32
    %c0 = arith.constant 0 : index
    %c0_0 = arith.constant 0 : index
    %1 = vector.load %arg3[%c0, %c0_0] : memref<128x128xf32, #tpu.memory_space<vmem>>, vector<128x128xf32>
    %c0_1 = arith.constant 0 : index
    %c0_2 = arith.constant 0 : index
    %2 = vector.load %arg4[%c0_1, %c0_2] : memref<1x128xf32, #tpu.memory_space<vmem>>, vector<1x128xf32>
    %cst = arith.constant 0.000000e+00 : f32
    %3 = vector.broadcast %cst : f32 to vector<10x18x128xf32>
    %c0_3 = arith.constant 0 : index
    %c0_4 = arith.constant 0 : index
    %c0_5 = arith.constant 0 : index
    %4 = vector.load %arg8[%c0_3, %c0_4, %c0_5] : memref<10x18x128xf32, #tpu.memory_space<vmem>>, vector<10x18x128xf32>
    tpu.vector_store %arg8[%c0_3, %c0_4, %c0_5], %3 {strides = array<i32>} : memref<10x18x128xf32, #tpu.memory_space<vmem>>, vector<10x18x128xf32>,
    %c0_6 = arith.constant 0 : index
    %5 = arith.index_cast %0 : i32 to index
    %c0_7 = arith.constant 0 : index
    %c0_8 = arith.constant 0 : index
    %6 = vector.load %arg2[%c0_6, %5, %c0_7, %c0_8] : memref<1x16x16x128xf32, #tpu.memory_space<vmem>>, vector<1x8x16x128xf32>
    %7 = vector.shape_cast %6 : vector<1x8x16x128xf32> to vector<8x16x128xf32>
    %8 = vector.shape_cast %7 : vector<8x16x128xf32> to vector<128x128xf32>
    %cst_9 = arith.constant dense<0.000000e+00> : vector<128x128xf32>
    %9 = tpu.matmul %8, %1, %cst_9 {dimension_numbers = #tpu.dot_dimension_numbers<[1], [0], [0], [1], [0, 0, 1, 1], [], []>} : vector<128x128xf32>, vector<128x128xf32>, vector<128x128xf32> -> vector<128x128xf32>
    %10 = vector.broadcast %2 : vector<1x128xf32> to vector<128x128xf32>
    %11 = arith.addf %9, %10 : vector<128x128xf32>
    %cst_10 = arith.constant 0.000000e+00 : f32
    %cst_11 = arith.constant 4.000000e+00 : f32
    %12 = vector.broadcast %cst_10 : f32 to vector<128x128xf32>
    %13 = arith.maximumf %12, %11 : vector<128x128xf32>
    %14 = vector.broadcast %cst_11 : f32 to vector<128x128xf32>
    %15 = arith.minimumf %14, %13 : vector<128x128xf32>
    %cst_12 = arith.constant 6.375000e+01 : f32
    %16 = vector.broadcast %cst_12 : f32 to vector<128x128xf32>
    %17 = arith.mulf %15, %16 : vector<128x128xf32>
    %18 = math.roundeven %17 : vector<128x128xf32>
    %cst_13 = arith.constant 0.0156862754 : f32
    %19 = vector.broadcast %cst_13 : f32 to vector<128x128xf32>
    %20 = arith.mulf %18, %19 : vector<128x128xf32>
    %21 = vector.shape_cast %20 : vector<128x128xf32> to vector<8x16x128xf32>
    %c1 = arith.constant 1 : index
    %c1_14 = arith.constant 1 : index
    %c0_15 = arith.constant 0 : index
    %22 = vector.load %arg8[%c1, %c1_14, %c0_15] : memref<10x18x128xf32, #tpu.memory_space<vmem>>, vector<8x16x128xf32>
    tpu.vector_store %arg8[%c1, %c1_14, %c0_15], %21 {strides = array<i32>} : memref<10x18x128xf32, #tpu.memory_space<vmem>>, vector<8x16x128xf32>,
    %c0_i32 = arith.constant 0 : i32
    %23 = arith.cmpi sgt, %arg1, %c0_i32 : i32
    %24 = arith.extui %23 : i1 to i32
    %c0_i32_16 = arith.constant 0 : i32
    %25 = arith.cmpi ne, %24, %c0_i32_16 : i32
    scf.if %25 {
      %c1_i32_64 = arith.constant 1 : i32
      %123 = arith.subi %0, %c1_i32_64 : i32
      %c0_65 = arith.constant 0 : index
      %124 = arith.index_cast %123 : i32 to index
      %c0_66 = arith.constant 0 : index
      %c0_67 = arith.constant 0 : index
      %125 = vector.load %arg2[%c0_65, %124, %c0_66, %c0_67] : memref<1x16x16x128xf32, #tpu.memory_space<vmem>>, vector<1x1x16x128xf32>
      %126 = vector.shape_cast %125 : vector<1x1x16x128xf32> to vector<1x16x128xf32>
      %127 = vector.shape_cast %126 : vector<1x16x128xf32> to vector<16x128xf32>
      %cst_68 = arith.constant dense<0.000000e+00> : vector<16x128xf32>
      %128 = tpu.matmul %127, %1, %cst_68 {dimension_numbers = #tpu.dot_dimension_numbers<[1], [0], [0], [1], [0, 0, 1, 1], [], []>} : vector<16x128xf32>, vector<128x128xf32>, vector<16x128xf32> -> vector<16x128xf32>
      %129 = vector.broadcast %2 : vector<1x128xf32> to vector<16x128xf32>
      %130 = arith.addf %128, %129 : vector<16x128xf32>
      %cst_69 = arith.constant 0.000000e+00 : f32
      %cst_70 = arith.constant 4.000000e+00 : f32
      %131 = vector.broadcast %cst_69 : f32 to vector<16x128xf32>
      %132 = arith.maximumf %131, %130 : vector<16x128xf32>
      %133 = vector.broadcast %cst_70 : f32 to vector<16x128xf32>
      %134 = arith.minimumf %133, %132 : vector<16x128xf32>
      %cst_71 = arith.constant 6.375000e+01 : f32
      %135 = vector.broadcast %cst_71 : f32 to vector<16x128xf32>
      %136 = arith.mulf %134, %135 : vector<16x128xf32>
      %137 = math.roundeven %136 : vector<16x128xf32>
      %cst_72 = arith.constant 0.0156862754 : f32
      %138 = vector.broadcast %cst_72 : f32 to vector<16x128xf32>
      %139 = arith.mulf %137, %138 : vector<16x128xf32>
      %140 = vector.shape_cast %139 : vector<16x128xf32> to vector<1x16x128xf32>
      %c0_73 = arith.constant 0 : index
      %c1_74 = arith.constant 1 : index
      %c0_75 = arith.constant 0 : index
      %141 = vector.load %arg8[%c0_73, %c1_74, %c0_75] : memref<10x18x128xf32, #tpu.memory_space<vmem>>, vector<1x16x128xf32>
      tpu.vector_store %arg8[%c0_73, %c1_74, %c0_75], %140 {strides = array<i32>} : memref<10x18x128xf32, #tpu.memory_space<vmem>>, vector<1x16x128xf32>,
    } else {
    }
    %c1_i32 = arith.constant 1 : i32
    %26 = arith.cmpi slt, %arg1, %c1_i32 : i32
    %27 = arith.extui %26 : i1 to i32
    %c0_i32_17 = arith.constant 0 : i32
    %28 = arith.cmpi ne, %27, %c0_i32_17 : i32
    scf.if %28 {
      %c8_i32_64 = arith.constant 8 : i32
      %123 = arith.addi %0, %c8_i32_64 : i32
      %c0_65 = arith.constant 0 : index
      %124 = arith.index_cast %123 : i32 to index
      %c0_66 = arith.constant 0 : index
      %c0_67 = arith.constant 0 : index
      %125 = vector.load %arg2[%c0_65, %124, %c0_66, %c0_67] : memref<1x16x16x128xf32, #tpu.memory_space<vmem>>, vector<1x1x16x128xf32>
      %126 = vector.shape_cast %125 : vector<1x1x16x128xf32> to vector<1x16x128xf32>
      %127 = vector.shape_cast %126 : vector<1x16x128xf32> to vector<16x128xf32>
      %cst_68 = arith.constant dense<0.000000e+00> : vector<16x128xf32>
      %128 = tpu.matmul %127, %1, %cst_68 {dimension_numbers = #tpu.dot_dimension_numbers<[1], [0], [0], [1], [0, 0, 1, 1], [], []>} : vector<16x128xf32>, vector<128x128xf32>, vector<16x128xf32> -> vector<16x128xf32>
      %129 = vector.broadcast %2 : vector<1x128xf32> to vector<16x128xf32>
      %130 = arith.addf %128, %129 : vector<16x128xf32>
      %cst_69 = arith.constant 0.000000e+00 : f32
      %cst_70 = arith.constant 4.000000e+00 : f32
      %131 = vector.broadcast %cst_69 : f32 to vector<16x128xf32>
      %132 = arith.maximumf %131, %130 : vector<16x128xf32>
      %133 = vector.broadcast %cst_70 : f32 to vector<16x128xf32>
      %134 = arith.minimumf %133, %132 : vector<16x128xf32>
      %cst_71 = arith.constant 6.375000e+01 : f32
      %135 = vector.broadcast %cst_71 : f32 to vector<16x128xf32>
      %136 = arith.mulf %134, %135 : vector<16x128xf32>
      %137 = math.roundeven %136 : vector<16x128xf32>
      %cst_72 = arith.constant 0.0156862754 : f32
      %138 = vector.broadcast %cst_72 : f32 to vector<16x128xf32>
      %139 = arith.mulf %137, %138 : vector<16x128xf32>
      %140 = vector.shape_cast %139 : vector<16x128xf32> to vector<1x16x128xf32>
      %c9 = arith.constant 9 : index
      %c1_73 = arith.constant 1 : index
      %c0_74 = arith.constant 0 : index
      %141 = vector.load %arg8[%c9, %c1_73, %c0_74] : memref<10x18x128xf32, #tpu.memory_space<vmem>>, vector<1x16x128xf32>
      tpu.vector_store %arg8[%c9, %c1_73, %c0_74], %140 {strides = array<i32>} : memref<10x18x128xf32, #tpu.memory_space<vmem>>, vector<1x16x128xf32>,
    } else {
    }
    %cst_18 = arith.constant 0.000000e+00 : f32
    %29 = vector.broadcast %cst_18 : f32 to vector<8x16x128xf32>
    %c0_19 = arith.constant 0 : index
    %c0_20 = arith.constant 0 : index
    %c0_21 = arith.constant 0 : index
    %30 = vector.load %arg8[%c0_19, %c0_20, %c0_21] : memref<10x18x128xf32, #tpu.memory_space<vmem>>, vector<10x16x128xf32>
    %31 = vector.extract_strided_slice %30 {offsets = [0, 0, 0], sizes = [8, 16, 128], strides = [1, 1, 1]} : vector<10x16x128xf32> to vector<8x16x128xf32>
    %c0_22 = arith.constant 0 : index
    %c0_23 = arith.constant 0 : index
    %c0_24 = arith.constant 0 : index
    %32 = vector.load %arg5[%c0_22, %c0_23, %c0_24] : memref<9x1x128xf32, #tpu.memory_space<vmem>>, vector<1x1x128xf32>
    %33 = vector.shape_cast %32 : vector<1x1x128xf32> to vector<1x128xf32>
    %34 = vector.shape_cast %33 : vector<1x128xf32> to vector<1x1x128xf32>
    %35 = vector.broadcast %34 : vector<1x1x128xf32> to vector<8x16x128xf32>
    %36 = arith.mulf %31, %35 : vector<8x16x128xf32>
    %37 = arith.addf %29, %36 : vector<8x16x128xf32>
    %38 = vector.extract_strided_slice %30 {offsets = [1, 0, 0], sizes = [8, 16, 128], strides = [1, 1, 1]} : vector<10x16x128xf32> to vector<8x16x128xf32>
    %c3 = arith.constant 3 : index
    %c0_25 = arith.constant 0 : index
    %c0_26 = arith.constant 0 : index
    %39 = vector.load %arg5[%c3, %c0_25, %c0_26] : memref<9x1x128xf32, #tpu.memory_space<vmem>>, vector<1x1x128xf32>
    %40 = vector.shape_cast %39 : vector<1x1x128xf32> to vector<1x128xf32>
    %41 = vector.shape_cast %40 : vector<1x128xf32> to vector<1x1x128xf32>
    %42 = vector.broadcast %41 : vector<1x1x128xf32> to vector<8x16x128xf32>
    %43 = arith.mulf %38, %42 : vector<8x16x128xf32>
    %44 = arith.addf %37, %43 : vector<8x16x128xf32>
    %45 = vector.extract_strided_slice %30 {offsets = [2, 0, 0], sizes = [8, 16, 128], strides = [1, 1, 1]} : vector<10x16x128xf32> to vector<8x16x128xf32>
    %c6 = arith.constant 6 : index
    %c0_27 = arith.constant 0 : index
    %c0_28 = arith.constant 0 : index
    %46 = vector.load %arg5[%c6, %c0_27, %c0_28] : memref<9x1x128xf32, #tpu.memory_space<vmem>>, vector<1x1x128xf32>
    %47 = vector.shape_cast %46 : vector<1x1x128xf32> to vector<1x128xf32>
    %48 = vector.shape_cast %47 : vector<1x128xf32> to vector<1x1x128xf32>
    %49 = vector.broadcast %48 : vector<1x1x128xf32> to vector<8x16x128xf32>
    %50 = arith.mulf %45, %49 : vector<8x16x128xf32>
    %51 = arith.addf %44, %50 : vector<8x16x128xf32>
    %c0_29 = arith.constant 0 : index
    %c1_30 = arith.constant 1 : index
    %c0_31 = arith.constant 0 : index
    %52 = vector.load %arg8[%c0_29, %c1_30, %c0_31] : memref<10x18x128xf32, #tpu.memory_space<vmem>>, vector<10x16x128xf32>
    %53 = vector.extract_strided_slice %52 {offsets = [0, 0, 0], sizes = [8, 16, 128], strides = [1, 1, 1]} : vector<10x16x128xf32> to vector<8x16x128xf32>
    %c1_32 = arith.constant 1 : index
    %c0_33 = arith.constant 0 : index
    %c0_34 = arith.constant 0 : index
    %54 = vector.load %arg5[%c1_32, %c0_33, %c0_34] : memref<9x1x128xf32, #tpu.memory_space<vmem>>, vector<1x1x128xf32>
    %55 = vector.shape_cast %54 : vector<1x1x128xf32> to vector<1x128xf32>
    %56 = vector.shape_cast %55 : vector<1x128xf32> to vector<1x1x128xf32>
    %57 = vector.broadcast %56 : vector<1x1x128xf32> to vector<8x16x128xf32>
    %58 = arith.mulf %53, %57 : vector<8x16x128xf32>
    %59 = arith.addf %51, %58 : vector<8x16x128xf32>
    %60 = vector.extract_strided_slice %52 {offsets = [1, 0, 0], sizes = [8, 16, 128], strides = [1, 1, 1]} : vector<10x16x128xf32> to vector<8x16x128xf32>
    %c4 = arith.constant 4 : index
    %c0_35 = arith.constant 0 : index
    %c0_36 = arith.constant 0 : index
    %61 = vector.load %arg5[%c4, %c0_35, %c0_36] : memref<9x1x128xf32, #tpu.memory_space<vmem>>, vector<1x1x128xf32>
    %62 = vector.shape_cast %61 : vector<1x1x128xf32> to vector<1x128xf32>
    %63 = vector.shape_cast %62 : vector<1x128xf32> to vector<1x1x128xf32>
    %64 = vector.broadcast %63 : vector<1x1x128xf32> to vector<8x16x128xf32>
    %65 = arith.mulf %60, %64 : vector<8x16x128xf32>
    %66 = arith.addf %59, %65 : vector<8x16x128xf32>
    %67 = vector.extract_strided_slice %52 {offsets = [2, 0, 0], sizes = [8, 16, 128], strides = [1, 1, 1]} : vector<10x16x128xf32> to vector<8x16x128xf32>
    %c7 = arith.constant 7 : index
    %c0_37 = arith.constant 0 : index
    %c0_38 = arith.constant 0 : index
    %68 = vector.load %arg5[%c7, %c0_37, %c0_38] : memref<9x1x128xf32, #tpu.memory_space<vmem>>, vector<1x1x128xf32>
    %69 = vector.shape_cast %68 : vector<1x1x128xf32> to vector<1x128xf32>
    %70 = vector.shape_cast %69 : vector<1x128xf32> to vector<1x1x128xf32>
    %71 = vector.broadcast %70 : vector<1x1x128xf32> to vector<8x16x128xf32>
    %72 = arith.mulf %67, %71 : vector<8x16x128xf32>
    %73 = arith.addf %66, %72 : vector<8x16x128xf32>
    %c0_39 = arith.constant 0 : index
    %c2 = arith.constant 2 : index
    %c0_40 = arith.constant 0 : index
    %74 = vector.load %arg8[%c0_39, %c2, %c0_40] : memref<10x18x128xf32, #tpu.memory_space<vmem>>, vector<10x16x128xf32>
    %75 = vector.extract_strided_slice %74 {offsets = [0, 0, 0], sizes = [8, 16, 128], strides = [1, 1, 1]} : vector<10x16x128xf32> to vector<8x16x128xf32>
    %c2_41 = arith.constant 2 : index
    %c0_42 = arith.constant 0 : index
    %c0_43 = arith.constant 0 : index
    %76 = vector.load %arg5[%c2_41, %c0_42, %c0_43] : memref<9x1x128xf32, #tpu.memory_space<vmem>>, vector<1x1x128xf32>
    %77 = vector.shape_cast %76 : vector<1x1x128xf32> to vector<1x128xf32>
    %78 = vector.shape_cast %77 : vector<1x128xf32> to vector<1x1x128xf32>
    %79 = vector.broadcast %78 : vector<1x1x128xf32> to vector<8x16x128xf32>
    %80 = arith.mulf %75, %79 : vector<8x16x128xf32>
    %81 = arith.addf %73, %80 : vector<8x16x128xf32>
    %82 = vector.extract_strided_slice %74 {offsets = [1, 0, 0], sizes = [8, 16, 128], strides = [1, 1, 1]} : vector<10x16x128xf32> to vector<8x16x128xf32>
    %c5 = arith.constant 5 : index
    %c0_44 = arith.constant 0 : index
    %c0_45 = arith.constant 0 : index
    %83 = vector.load %arg5[%c5, %c0_44, %c0_45] : memref<9x1x128xf32, #tpu.memory_space<vmem>>, vector<1x1x128xf32>
    %84 = vector.shape_cast %83 : vector<1x1x128xf32> to vector<1x128xf32>
    %85 = vector.shape_cast %84 : vector<1x128xf32> to vector<1x1x128xf32>
    %86 = vector.broadcast %85 : vector<1x1x128xf32> to vector<8x16x128xf32>
    %87 = arith.mulf %82, %86 : vector<8x16x128xf32>
    %88 = arith.addf %81, %87 : vector<8x16x128xf32>
    %89 = vector.extract_strided_slice %74 {offsets = [2, 0, 0], sizes = [8, 16, 128], strides = [1, 1, 1]} : vector<10x16x128xf32> to vector<8x16x128xf32>
    %c8 = arith.constant 8 : index
    %c0_46 = arith.constant 0 : index
    %c0_47 = arith.constant 0 : index
    %90 = vector.load %arg5[%c8, %c0_46, %c0_47] : memref<9x1x128xf32, #tpu.memory_space<vmem>>, vector<1x1x128xf32>
    %91 = vector.shape_cast %90 : vector<1x1x128xf32> to vector<1x128xf32>
    %92 = vector.shape_cast %91 : vector<1x128xf32> to vector<1x1x128xf32>
    %93 = vector.broadcast %92 : vector<1x1x128xf32> to vector<8x16x128xf32>
    %94 = arith.mulf %89, %93 : vector<8x16x128xf32>
    %95 = arith.addf %88, %94 : vector<8x16x128xf32>
    %c0_48 = arith.constant 0 : index
    %c0_49 = arith.constant 0 : index
    %96 = vector.load %arg6[%c0_48, %c0_49] : memref<1x128xf32, #tpu.memory_space<vmem>>, vector<1x128xf32>
    %97 = vector.shape_cast %96 : vector<1x128xf32> to vector<1x1x128xf32>
    %98 = vector.broadcast %97 : vector<1x1x128xf32> to vector<8x16x128xf32>
    %99 = arith.addf %95, %98 : vector<8x16x128xf32>
    %cst_50 = arith.constant 0.000000e+00 : f32
    %cst_51 = arith.constant 4.000000e+00 : f32
    %100 = vector.broadcast %cst_50 : f32 to vector<8x16x128xf32>
    %101 = arith.maximumf %100, %99 : vector<8x16x128xf32>
    %102 = vector.broadcast %cst_51 : f32 to vector<8x16x128xf32>
    %103 = arith.minimumf %102, %101 : vector<8x16x128xf32>
    %cst_52 = arith.constant 6.375000e+01 : f32
    %104 = vector.broadcast %cst_52 : f32 to vector<8x16x128xf32>
    %105 = arith.mulf %103, %104 : vector<8x16x128xf32>
    %106 = math.roundeven %105 : vector<8x16x128xf32>
    %cst_53 = arith.constant 0.0156862754 : f32
    %107 = vector.broadcast %cst_53 : f32 to vector<8x16x128xf32>
    %108 = arith.mulf %106, %107 : vector<8x16x128xf32>
    %c0_54 = arith.constant 0 : index
    %109 = arith.index_cast %0 : i32 to index
    %c0_55 = arith.constant 0 : index
    %c0_56 = arith.constant 0 : index
    %110 = vector.load %arg2[%c0_54, %109, %c0_55, %c0_56] : memref<1x16x16x128xf32, #tpu.memory_space<vmem>>, vector<1x8x16x128xf32>
    %111 = vector.shape_cast %110 : vector<1x8x16x128xf32> to vector<8x16x128xf32>
    %112 = arith.addf %108, %111 : vector<8x16x128xf32>
    %cst_57 = arith.constant 5.000000e-01 : f32
    %113 = vector.broadcast %cst_57 : f32 to vector<8x16x128xf32>
    %114 = arith.mulf %112, %113 : vector<8x16x128xf32>
    %cst_58 = arith.constant 6.375000e+01 : f32
    %115 = vector.broadcast %cst_58 : f32 to vector<8x16x128xf32>
    %116 = arith.mulf %114, %115 : vector<8x16x128xf32>
    %117 = math.floor %116 : vector<8x16x128xf32>
    %cst_59 = arith.constant 0.0156862754 : f32
    %118 = vector.broadcast %cst_59 : f32 to vector<8x16x128xf32>
    %119 = arith.mulf %117, %118 : vector<8x16x128xf32>
    %c0_60 = arith.constant 0 : index
    %c0_61 = arith.constant 0 : index
    %c0_62 = arith.constant 0 : index
    %c0_63 = arith.constant 0 : index
    %120 = vector.load %arg7[%c0_60, %c0_61, %c0_62, %c0_63] : memref<1x8x16x128xf32, #tpu.memory_space<vmem>>, vector<1x8x16x128xf32>
    %121 = vector.shape_cast %120 : vector<1x8x16x128xf32> to vector<8x16x128xf32>
    %122 = vector.shape_cast %119 : vector<8x16x128xf32> to vector<1x8x16x128xf32>
    tpu.vector_store %arg7[%c0_60, %c0_61, %c0_62, %c0_63], %122 {strides = array<i32>} : memref<1x8x16x128xf32, #tpu.memory_space<vmem>>, vector<1x8x16x128xf32>,
    return
  }
  func.func @transform_0(%arg0: i32, %arg1: i32) -> (i32, i32, i32, i32) {
    %c0_i32 = arith.constant 0 : i32
    %c0_i32_0 = arith.constant 0 : i32
    %c0_i32_1 = arith.constant 0 : i32
    %c0_i32_2 = arith.constant 0 : i32
    return %arg0, %c0_i32, %c0_i32_0, %c0_i32_1 : i32, i32, i32, i32
  }
  func.func @transform_1(%arg0: i32, %arg1: i32) -> (i32, i32) {
    %c0_i32 = arith.constant 0 : i32
    %c0_i32_0 = arith.constant 0 : i32
    %c0_i32_1 = arith.constant 0 : i32
    return %c0_i32, %c0_i32_0 : i32, i32
  }
  func.func @transform_2(%arg0: i32, %arg1: i32) -> (i32, i32) {
    %c0_i32 = arith.constant 0 : i32
    %c0_i32_0 = arith.constant 0 : i32
    %c0_i32_1 = arith.constant 0 : i32
    return %c0_i32, %c0_i32_0 : i32, i32
  }
  func.func @transform_3(%arg0: i32, %arg1: i32) -> (i32, i32, i32) {
    %c0_i32 = arith.constant 0 : i32
    %c0_i32_0 = arith.constant 0 : i32
    %c0_i32_1 = arith.constant 0 : i32
    %c0_i32_2 = arith.constant 0 : i32
    return %c0_i32, %c0_i32_0, %c0_i32_1 : i32, i32, i32
  }
  func.func @transform_4(%arg0: i32, %arg1: i32) -> (i32, i32) {
    %c0_i32 = arith.constant 0 : i32
    %c0_i32_0 = arith.constant 0 : i32
    %c0_i32_1 = arith.constant 0 : i32
    return %c0_i32, %c0_i32_0 : i32, i32
  }
  func.func @transform_5(%arg0: i32, %arg1: i32) -> (i32, i32, i32, i32) {
    %c0_i32 = arith.constant 0 : i32
    %c0_i32_0 = arith.constant 0 : i32
    %c0_i32_1 = arith.constant 0 : i32
    return %arg0, %arg1, %c0_i32, %c0_i32_0 : i32, i32, i32, i32
  }
}

</mosaic_0001>

<llo_original>
// kernel: tpu_custom_call.1
$region0: #{tpu_custom_call.1}
  #allocation0 [shape = 'u32[]', space=smem, size = 0x4, offset = 0x4, fixed_abs, tag = 'smem constant byte address 0x4 - core index']
  #allocation1 [shape = 'u32[144,128]{1,0:T(1,128)}', space=vmem, size = 0x12000, scoped, tag = 'internal scratch']
  #allocation2 [shape = 'f32[10,18,128]{2,1,0:T(8,128)}', space=vmem, size = 0x1e000, scoped, tag = 'scratch operand']
  %s0 = inlined_call_operand.hbm [shape: f32[2,16,16,128], index: 0, kind: input, shape index: {}]
  %s1 = inlined_call_operand.hbm [shape: f32[128,128], index: 1, kind: input, shape index: {}]
  %s2 = inlined_call_operand.vmem [shape: f32[1,128], index: 2, kind: input, shape index: {}]
  %s3 = inlined_call_operand.vmem [shape: f32[9,1,128], index: 3, kind: input, shape index: {}]
  %s4 = inlined_call_operand.vmem [shape: f32[1,128], index: 4, kind: input, shape index: {}]
  %s5 = inlined_call_operand.hbm [shape: f32[2,16,16,128], index: 5, kind: output, shape index: {}]
  %s6 = sld [smem:[#allocation0]]
  $region69: #{tpu_custom_call.1} parent=0
    _
  %s8 = ssub.s32 1, %s6
  %s9 = scalar_select 0, %s8, %s6
  $region1: #{tpu_custom_call.1} parent=0
    #allocation3 [shape = 'u8[262144]{0}', space=vmem, size = 0x40000, scoped, tag = 'input window, operand 0']
    #allocation4 [shape = 's32[2]{0}', space=sflag, size = 0x8, scoped, tag = 'scoped memory for tpu_custom_call.1']
    #allocation5 [shape = 's32[2]{0}', space=sflag, size = 0x8, scoped, tag = 'scoped memory for tpu_custom_call.1']
    #allocation6 [shape = 'u8[65536]{0}', space=vmem, size = 0x10000, scoped, tag = 'input window, operand 1, single buffered']
    #allocation7 [shape = 's32[1]{0}', space=sflag, size = 0x4, scoped, tag = 'scoped memory for tpu_custom_call.1']
    #allocation8 [shape = 'u8[131072]{0}', space=vmem, size = 0x20000, scoped, tag = 'output window, operand 0']
    %10 = vsyncpa [#allocation4], 0
    %s11 = scalar_lea.sflag [#allocation4], 1
    %12 = vsyncpa %s11, 0
    %13 = vsyncpa [#allocation7], 0
    %14 = vsyncpa [#allocation5], 0
    %s15 = scalar_lea.sflag [#allocation5], 1
    %16 = vsyncpa %s15, 0
    loop: start=0, step=1, limit=6
    $region2: #{tpu_custom_call.1} parent=1 // loop_pre_header
      _
    $region3: #{tpu_custom_call.1} parent=1 // loop_header
      %s18 = sphi 0, %s22
      %p19 = scmp.ge.s32.totalorder %s18, 6
      %s25 = sphi 0, %s37
      %s26 = sphi 0, %s33
      %s27 = sphi 0, %s25
      %s28 = sphi 0, %s26
      %s29 = sphi 0, %s27
      %s30 = sphi 0, %s28
      %s40 = sphi 0, %s42
      %s43 = sphi 0, %s40
      %s44 = sphi 0, %s43
      %s60 = sphi 0, %s44
      %s64 = sphi 0, %s64
      %s66 = sphi 0, %s64
      %s67 = sphi 0, %s66
      %s81 = sphi 0, %s67
      %s85 = sphi 0, %s85
      %s87 = sphi 0, %s85
      %s88 = sphi 0, %s87
      %s102 = sphi 0, %s88
      %s106 = sphi 0, %s106
      %s108 = sphi 0, %s106
      %s109 = sphi 0, %s108
      %s123 = sphi 0, %s109
      %s127 = sphi 0, %s127
      %s129 = sphi 0, %s127
      %s130 = sphi 0, %s129
      %s144 = sphi 0, %s130
      %s152 = sphi 0, %s154
      %s155 = sphi 0, %s152
      %s156 = sphi 0, %s155
      %s172 = sphi 0, %s156
    $region4: #{tpu_custom_call.1} parent=1 // loop_header_branch
      %21 = sbr.rel (%p19) target = $region8
    $region5: #{tpu_custom_call.1} parent=1 // loop_body
      %s23 = ssub.s32 %s18, 1
      %s24 = ssub.s32 %s18, 2
      %s31 = sadd.s32 1, %s26
      %p32 = scmp.ge.s32.totalorder %s31, 2
      %s33 = scalar_select %p32, 0, %s31
      %s34 = sadd.s32 1, %s25
      %s35 = scalar_select %p32, %s34, %s25
      %p36 = scmp.ge.s32.totalorder %s35, 2
      %s37 = scalar_select %p36, 0, %s35
      %s38 = ssub.s32 %s25, %s37
      %p39 = scmp.eq.s32.totalorder %s38, 0
      %s41 = sadd.s32 %s40, 1
      %s42 = scalar_select %p39, %s40, %s41
      %p45 = pneg %p39
      %p46 = scmp.eq.s32.totalorder %s18, 3
      %p47 = por %p45, %p46
      %p48 = scmp.ne.s32.totalorder %s40, %s43
      %p49 = scmp.eq.s32.totalorder %s18, 0
      %p50 = por %p48, %p49
      %p51 = scmp.ne.s32.totalorder %s40, %s43
      %p52 = scmp.eq.s32.totalorder %s23, 3
      %p53 = por %p51, %p52
      %p54 = scmp.ne.s32.totalorder %s43, %s44
      %p55 = scmp.eq.s32.totalorder %s23, 0
      %p56 = por %p54, %p55
      %p57 = scmp.ne.s32.totalorder %s43, %s44
      %p58 = scmp.eq.s32.totalorder %s24, 3
      %p59 = por %p57, %p58
      %p61 = scmp.ne.s32.totalorder %s44, %s60
      %p62 = scmp.eq.s32.totalorder %s24, 0
      %p63 = por %p61, %p62
      %s65 = sadd.s32 %s64, 1
      %p68 = scmp.eq.s32.totalorder %s18, 3
      %p69 = scmp.ne.s32.totalorder %s64, %s66
      %p70 = scmp.eq.s32.totalorder %s18, 0
      %p71 = por %p69, %p70
      %p72 = scmp.ne.s32.totalorder %s64, %s66
      %p73 = scmp.eq.s32.totalorder %s23, 3
      %p74 = por %p72, %p73
      %p75 = scmp.ne.s32.totalorder %s66, %s67
      %p76 = scmp.eq.s32.totalorder %s23, 0
      %p77 = por %p75, %p76
      %p78 = scmp.ne.s32.totalorder %s66, %s67
      %p79 = scmp.eq.s32.totalorder %s24, 3
      %p80 = por %p78, %p79
      %p82 = scmp.ne.s32.totalorder %s67, %s81
      %p83 = scmp.eq.s32.totalorder %s24, 0
      %p84 = por %p82, %p83
      %s86 = sadd.s32 %s85, 1
      %p89 = scmp.eq.s32.totalorder %s18, 3
      %p90 = scmp.ne.s32.totalorder %s85, %s87
      %p91 = scmp.eq.s32.totalorder %s18, 0
      %p92 = por %p90, %p91
      %p93 = scmp.ne.s32.totalorder %s85, %s87
      %p94 = scmp.eq.s32.totalorder %s23, 3
      %p95 = por %p93, %p94
      %p96 = scmp.ne.s32.totalorder %s87, %s88
      %p97 = scmp.eq.s32.totalorder %s23, 0
      %p98 = por %p96, %p97
      %p99 = scmp.ne.s32.totalorder %s87, %s88
      %p100 = scmp.eq.s32.totalorder %s24, 3
      %p101 = por %p99, %p100
      %p103 = scmp.ne.s32.totalorder %s88, %s102
      %p104 = scmp.eq.s32.totalorder %s24, 0
      %p105 = por %p103, %p104
      %s107 = sadd.s32 %s106, 1
      %p110 = scmp.eq.s32.totalorder %s18, 3
      %p111 = scmp.ne.s32.totalorder %s106, %s108
      %p112 = scmp.eq.s32.totalorder %s18, 0
      %p113 = por %p111, %p112
      %p114 = scmp.ne.s32.totalorder %s106, %s108
      %p115 = scmp.eq.s32.totalorder %s23, 3
      %p116 = por %p114, %p115
      %p117 = scmp.ne.s32.totalorder %s108, %s109
      %p118 = scmp.eq.s32.totalorder %s23, 0
      %p119 = por %p117, %p118
      %p120 = scmp.ne.s32.totalorder %s108, %s109
      %p121 = scmp.eq.s32.totalorder %s24, 3
      %p122 = por %p120, %p121
      %p124 = scmp.ne.s32.totalorder %s109, %s123
      %p125 = scmp.eq.s32.totalorder %s24, 0
      %p126 = por %p124, %p125
      %s128 = sadd.s32 %s127, 1
      %p131 = scmp.eq.s32.totalorder %s18, 3
      %p132 = scmp.ne.s32.totalorder %s127, %s129
      %p133 = scmp.eq.s32.totalorder %s18, 0
      %p134 = por %p132, %p133
      %p135 = scmp.ne.s32.totalorder %s127, %s129
      %p136 = scmp.eq.s32.totalorder %s23, 3
      %p137 = por %p135, %p136
      %p138 = scmp.ne.s32.totalorder %s129, %s130
      %p139 = scmp.eq.s32.totalorder %s23, 0
      %p140 = por %p138, %p139
      %p141 = scmp.ne.s32.totalorder %s129, %s130
      %p142 = scmp.eq.s32.totalorder %s24, 3
      %p143 = por %p141, %p142
      %p145 = scmp.ne.s32.totalorder %s130, %s144
      %p146 = scmp.eq.s32.totalorder %s24, 0
      %p147 = por %p145, %p146
      %s148 = ssub.s32 %s25, %s37
      %s149 = ssub.s32 %s26, %s33
      %s150 = sor.u32 %s148, %s149
      %p151 = scmp.eq.s32.totalorder %s150, 0
      %s153 = sadd.s32 %s152, 1
      %s154 = scalar_select %p151, %s152, %s153
      %p157 = pneg %p151
      %p158 = scmp.eq.s32.totalorder %s18, 3
      %p159 = por %p157, %p158
      %p160 = scmp.ne.s32.totalorder %s152, %s155
      %p161 = scmp.eq.s32.totalorder %s18, 0
      %p162 = por %p160, %p161
      %p163 = scmp.ne.s32.totalorder %s152, %s155
      %p164 = scmp.eq.s32.totalorder %s23, 3
      %p165 = por %p163, %p164
      %p166 = scmp.ne.s32.totalorder %s155, %s156
      %p167 = scmp.eq.s32.totalorder %s23, 0
      %p168 = por %p166, %p167
      %p169 = scmp.ne.s32.totalorder %s155, %s156
      %p170 = scmp.eq.s32.totalorder %s24, 3
      %p171 = por %p169, %p170
      %p173 = scmp.ne.s32.totalorder %s156, %s172
      %p174 = scmp.eq.s32.totalorder %s24, 0
      %p175 = por %p173, %p174
      %p176 = scmp.le.s32.totalorder 1, %s18
      %p177 = scmp.lt.s32.totalorder %s18, 5
      %p178 = pnand %p176, %p177
      %p179 = pneg %p178
      // Predicated region
      $region9: #{tpu_custom_call.1} parent=5 // pred_check
        _
      $region10: #{tpu_custom_call.1} parent=5 // pred_check_branch
        %181 = sbr.rel (%p178) target = $region12
      $region11: #{tpu_custom_call.1} parent=5 // pred_region
        %s182 = ssub.s32 %s18, 1
        // Predicated region
        $region13: #{tpu_custom_call.1} parent=11 // pred_check
          %p183 = pneg %p77
        $region14: #{tpu_custom_call.1} parent=11 // pred_check_branch
          %185 = sbr.rel (%p183) target = $region16
        $region15: #{tpu_custom_call.1} parent=11 // pred_region
          %s187 = ssub.s32 2048, 2048
          %188 = vsyncadd [#allocation7], %s187
          %s189 = sshll.u32 [#allocation6], 4
          %s190 = int_to_ptr.vmem [resolvable:$true] %s189
          %195 = dma.hbm_to_vmem [thread:$0]  %s1, 2048, %s190, [#allocation7], 128, 128, 8
        $region16: #{tpu_custom_call.1} parent=11 // pred_fallthru
          _
        // Predicated region
        $region17: #{tpu_custom_call.1} parent=11 // pred_check
          %p196 = pneg %p98
        $region18: #{tpu_custom_call.1} parent=11 // pred_check_branch
          %198 = sbr.rel (%p196) target = $region20
        $region19: #{tpu_custom_call.1} parent=11 // pred_region
          _
        $region20: #{tpu_custom_call.1} parent=11 // pred_fallthru
          _
        // Predicated region
        $region21: #{tpu_custom_call.1} parent=11 // pred_check
          %p199 = pneg %p119
        $region22: #{tpu_custom_call.1} parent=11 // pred_check_branch
          %201 = sbr.rel (%p199) target = $region24
        $region23: #{tpu_custom_call.1} parent=11 // pred_region
          _
        $region24: #{tpu_custom_call.1} parent=11 // pred_fallthru
          _
        // Predicated region
        $region25: #{tpu_custom_call.1} parent=11 // pred_check
          %p202 = pneg %p140
        $region26: #{tpu_custom_call.1} parent=11 // pred_check_branch
          %204 = sbr.rel (%p202) target = $region28
        $region27: #{tpu_custom_call.1} parent=11 // pred_region
          _
        $region28: #{tpu_custom_call.1} parent=11 // pred_fallthru
          _
      $region12: #{tpu_custom_call.1} parent=5 // pred_fallthru
        _
      %p205 = scmp.lt.s32.totalorder %s18, 4
      // Predicated region
      $region29: #{tpu_custom_call.1} parent=5 // pred_check
        %p206 = pneg %p205
      $region30: #{tpu_custom_call.1} parent=5 // pred_check_branch
        %208 = sbr.rel (%p206) target = $region32
      $region31: #{tpu_custom_call.1} parent=5 // pred_region
        // Predicated region
        $region33: #{tpu_custom_call.1} parent=31 // pred_check
          %p209 = pneg %p50
        $region34: #{tpu_custom_call.1} parent=31 // pred_check_branch
          %211 = sbr.rel (%p209) target = $region36
        $region35: #{tpu_custom_call.1} parent=31 // pred_region
          %s212 = sand.u32 %s40, 1
          %s213 = scalar_lea.sflag [#allocation4], %s212
          %s214 = sand.u32 %s40, 1
          %s215 = smul.addr %s214, 256
          %s216 = scalar_lea.vmem [#allocation3], %s215
          %s218 = ssub.s32 4096, 4096
          %219 = vsyncadd %s213, %s218
          %s220 = smul.addr %s25, 32
          %s221 = smul.addr %s220, 128
          %s222 = scalar_lea.hbm %s0, %s221
          %s223 = sshll.u32 %s216, 4
          %s224 = int_to_ptr.vmem [resolvable:$true] %s223
          %229 = dma.hbm_to_vmem [thread:$0]  %s222, 4096, %s224, %s213, 128, 128, 8
        $region36: #{tpu_custom_call.1} parent=31 // pred_fallthru
          _
      $region32: #{tpu_custom_call.1} parent=5 // pred_fallthru
        _
      %p230 = scmp.le.s32.totalorder 1, %s18
      %p231 = scmp.lt.s32.totalorder %s18, 5
      %p232 = pnand %p230, %p231
      %p233 = pneg %p232
      // Predicated region
      $region37: #{tpu_custom_call.1} parent=5 // pred_check
        _
      $region38: #{tpu_custom_call.1} parent=5 // pred_check_branch
        %235 = sbr.rel (%p232) target = $region40
      $region39: #{tpu_custom_call.1} parent=5 // pred_region
        %s236 = ssub.s32 %s18, 1
        %s237 = sand.u32 %s43, 1
        %s238 = scalar_lea.sflag [#allocation4], %s237
        %s239 = sand.u32 %s43, 1
        %s240 = smul.addr %s239, 256
        %s241 = scalar_lea.vmem [#allocation3], %s240
        // Predicated region
        $region41: #{tpu_custom_call.1} parent=39 // pred_check
          %p242 = pneg %p56
        $region42: #{tpu_custom_call.1} parent=39 // pred_check_branch
          %244 = sbr.rel (%p242) target = $region44
        $region43: #{tpu_custom_call.1} parent=39 // pred_region
          %245 = dma.done %s238, 4096
        $region44: #{tpu_custom_call.1} parent=39 // pred_fallthru
          _
        // Predicated region
        $region45: #{tpu_custom_call.1} parent=39 // pred_check
          %p246 = pneg %p77
        $region46: #{tpu_custom_call.1} parent=39 // pred_check_branch
          %248 = sbr.rel (%p246) target = $region48
        $region47: #{tpu_custom_call.1} parent=39 // pred_region
          %249 = dma.done [#allocation7], 2048
        $region48: #{tpu_custom_call.1} parent=39 // pred_fallthru
          _
        %s250 = sand.u32 %s43, 1
        %s251 = scalar_lea.sflag [#allocation4], %s250
        %s252 = sand.u32 %s43, 1
        %s253 = smul.addr %s252, 256
        %s254 = scalar_lea.vmem [#allocation3], %s253
        %p255 = pneg %p56
        %p256 = pneg %p53
        %p257 = pneg %p77
        %p258 = pneg %p74
        %p259 = pneg %p98
        %p260 = pneg %p95
        %p261 = pneg %p119
        %p262 = pneg %p116
        %p263 = pneg %p140
        %p264 = pneg %p137
        %p265 = pneg %p168
        %p266 = pneg %p165
        %s267 = sand.u32 %s155, 1
        %s268 = scalar_lea.sflag [#allocation5], %s267
        %s269 = sand.u32 %s155, 1
        %s270 = smul.addr %s269, 128
        %s271 = scalar_lea.vmem [#allocation8], %s270
        %s272 = smul.u32 8, %s28
        %s273 = smul.u32 %s28, 8
        %v274 = vld [vmem:[#allocation6] sm:$0xff]
        %v275 = vld [vmem:[#allocation6 + $0x8] sm:$0xff]
        %v276 = vld [vmem:[#allocation6 + $0x10] sm:$0xff]
        %v277 = vld [vmem:[#allocation6 + $0x18] sm:$0xff]
        %v278 = vld [vmem:[#allocation6 + $0x20] sm:$0xff]
        %v279 = vld [vmem:[#allocation6 + $0x28] sm:$0xff]
        %v280 = vld [vmem:[#allocation6 + $0x30] sm:$0xff]
        %v281 = vld [vmem:[#allocation6 + $0x38] sm:$0xff]
        %v282 = vld [vmem:[#allocation6 + $0x40] sm:$0xff]
        %v283 = vld [vmem:[#allocation6 + $0x48] sm:$0xff]
        %v284 = vld [vmem:[#allocation6 + $0x50] sm:$0xff]
        %v285 = vld [vmem:[#allocation6 + $0x58] sm:$0xff]
        %v286 = vld [vmem:[#allocation6 + $0x60] sm:$0xff]
        %v287 = vld [vmem:[#allocation6 + $0x68] sm:$0xff]
        %v288 = vld [vmem:[#allocation6 + $0x70] sm:$0xff]
        %v289 = vld [vmem:[#allocation6 + $0x78] sm:$0xff]
        %v290 = vld [vmem:[%s2] sm:$0x1]
        %291 = vst [vmem:[#allocation2] sm:$0xff] 0.0
        %292 = vst [vmem:[#allocation2 + $0x8] sm:$0xff] 0.0
        %293 = vst [vmem:[#allocation2 + $0x10] sm:$0x3] 0.0
        %294 = vst [vmem:[#allocation2 + $0x18] sm:$0xff] 0.0
        %295 = vst [vmem:[#allocation2 + $0x20] sm:$0xff] 0.0
        %296 = vst [vmem:[#allocation2 + $0x28] sm:$0x3] 0.0
        %297 = vst [vmem:[#allocation2 + $0x30] sm:$0xff] 0.0
        %298 = vst [vmem:[#allocation2 + $0x38] sm:$0xff] 0.0
        %299 = vst [vmem:[#allocation2 + $0x40] sm:$0x3] 0.0
        %300 = vst [vmem:[#allocation2 + $0x48] sm:$0xff] 0.0
        %301 = vst [vmem:[#allocation2 + $0x50] sm:$0xff] 0.0
        %302 = vst [vmem:[#allocation2 + $0x58] sm:$0x3] 0.0
        %303 = vst [vmem:[#allocation2 + $0x60] sm:$0xff] 0.0
        %304 = vst [vmem:[#allocation2 + $0x68] sm:$0xff] 0.0
        %305 = vst [vmem:[#allocation2 + $0x70] sm:$0x3] 0.0
        %306 = vst [vmem:[#allocation2 + $0x78] sm:$0xff] 0.0
        %307 = vst [vmem:[#allocation2 + $0x80] sm:$0xff] 0.0
        %308 = vst [vmem:[#allocation2 + $0x88] sm:$0x3] 0.0
        %309 = vst [vmem:[#allocation2 + $0x90] sm:$0xff] 0.0
        %310 = vst [vmem:[#allocation2 + $0x98] sm:$0xff] 0.0
        %311 = vst [vmem:[#allocation2 + $0xa0] sm:$0x3] 0.0
        %312 = vst [vmem:[#allocation2 + $0xa8] sm:$0xff] 0.0
        %313 = vst [vmem:[#allocation2 + $0xb0] sm:$0xff] 0.0
        %314 = vst [vmem:[#allocation2 + $0xb8] sm:$0x3] 0.0
        %315 = vst [vmem:[#allocation2 + $0xc0] sm:$0xff] 0.0
        %316 = vst [vmem:[#allocation2 + $0xc8] sm:$0xff] 0.0
        %317 = vst [vmem:[#allocation2 + $0xd0] sm:$0x3] 0.0
        %318 = vst [vmem:[#allocation2 + $0xd8] sm:$0xff] 0.0
        %319 = vst [vmem:[#allocation2 + $0xe0] sm:$0xff] 0.0
        %320 = vst [vmem:[#allocation2 + $0xe8] sm:$0x3] 0.0
        %s321 = smul.u32 %s273, 16
        %s322 = scalar_lea.vmem %s241, %s321 [#allocation3]
        %v323 = vld [vmem:[%s322] sm:$0xff]
        %v324 = vld [vmem:[%s322 + $0x8] sm:$0xff]
        %v325 = vld [vmem:[%s322 + $0x10] sm:$0xff]
        %v326 = vld [vmem:[%s322 + $0x18] sm:$0xff]
        %v327 = vld [vmem:[%s322 + $0x20] sm:$0xff]
        %v328 = vld [vmem:[%s322 + $0x28] sm:$0xff]
        %v329 = vld [vmem:[%s322 + $0x30] sm:$0xff]
        %v330 = vld [vmem:[%s322 + $0x38] sm:$0xff]
        %v331 = vld [vmem:[%s322 + $0x40] sm:$0xff]
        %v332 = vld [vmem:[%s322 + $0x48] sm:$0xff]
        %v333 = vld [vmem:[%s322 + $0x50] sm:$0xff]
        %v334 = vld [vmem:[%s322 + $0x58] sm:$0xff]
        %v335 = vld [vmem:[%s322 + $0x60] sm:$0xff]
        %v336 = vld [vmem:[%s322 + $0x68] sm:$0xff]
        %v337 = vld [vmem:[%s322 + $0x70] sm:$0xff]
        %v338 = vld [vmem:[%s322 + $0x78] sm:$0xff]
        %v340 = vlaneseq
        %v341 = vshrl.u32 %v340, 7
        %v342 = vsub.s32 0, %v341
        %v343 = vrot.slane %v290, %v342
        %345 = vmatprep.subr.mxu0 0.0
        %346 = vmatpush1.msra.mxu0 %v274
        %347 = vmatprep.subr.mxu0 0.0
        %348 = vmatpush1.msra.mxu0 %v275
        %349 = vmatprep.subr.mxu0 0.0
        %350 = vmatpush1.msra.mxu0 %v276
        %351 = vmatprep.subr.mxu0 0.0
        %352 = vmatpush1.msra.mxu0 %v277
        %353 = vmatprep.subr.mxu0 0.0
        %354 = vmatpush1.msra.mxu0 %v278
        %355 = vmatprep.subr.mxu0 0.0
        %356 = vmatpush1.msra.mxu0 %v279
        %357 = vmatprep.subr.mxu0 0.0
        %358 = vmatpush1.msra.mxu0 %v280
        %359 = vmatprep.subr.mxu0 0.0
        %360 = vmatpush1.msra.mxu0 %v281
        %361 = vmatprep.subr.mxu0 0.0
        %362 = vmatpush1.msra.mxu0 %v282
        %363 = vmatprep.subr.mxu0 0.0
        %364 = vmatpush1.msra.mxu0 %v283
        %365 = vmatprep.subr.mxu0 0.0
        %366 = vmatpush1.msra.mxu0 %v284
        %367 = vmatprep.subr.mxu0 0.0
        %368 = vmatpush1.msra.mxu0 %v285
        %369 = vmatprep.subr.mxu0 0.0
        %370 = vmatpush1.msra.mxu0 %v286
        %371 = vmatprep.subr.mxu0 0.0
        %372 = vmatpush1.msra.mxu0 %v287
        %373 = vmatprep.subr.mxu0 0.0
        %374 = vmatpush1.msra.mxu0 %v288
        %375 = vmatprep.subr.mxu0 0.0
        %376 = vmatpush1.msra.mxu0 %v289
        %377 = vmatprep.subr.mxu0 0.0
        %378 = vmatpush1.msra.mxu0 0.0
        %379 = vmatprep.subr.mxu0 0.0
        %380 = vmatpush1.msra.mxu0 0.0
        %381 = vmatprep.subr.mxu0 0.0
        %382 = vmatpush1.msra.mxu0 0.0
        %383 = vmatprep.subr.mxu0 0.0
        %384 = vmatpush1.msra.mxu0 0.0
        %385 = vmatprep.subr.mxu0 0.0
        %386 = vmatpush1.msra.mxu0 0.0
        %387 = vmatprep.subr.mxu0 0.0
        %388 = vmatpush1.msra.mxu0 0.0
        %389 = vmatprep.subr.mxu0 0.0
        %390 = vmatpush1.msra.mxu0 0.0
        %391 = vmatprep.subr.mxu0 0.0
        %392 = vmatpush1.msra.mxu0 0.0
        %393 = vmatprep.subr.mxu0 0.0
        %394 = vmatpush1.msra.mxu0 0.0
        %395 = vmatprep.subr.mxu0 0.0
        %396 = vmatpush1.msra.mxu0 0.0
        %397 = vmatprep.subr.mxu0 0.0
        %398 = vmatpush1.msra.mxu0 0.0
        %399 = vmatprep.subr.mxu0 0.0
        %400 = vmatpush1.msra.mxu0 0.0
        %401 = vmatprep.subr.mxu0 0.0
        %402 = vmatpush1.msra.mxu0 0.0
        %403 = vmatprep.subr.mxu0 0.0
        %404 = vmatpush1.msra.mxu0 0.0
        %405 = vmatprep.subr.mxu0 0.0
        %406 = vmatpush1.msra.mxu0 0.0
        %407 = vmatprep.subr.mxu0 0.0
        %408 = vmatpush1.msra.mxu0 0.0
        %409 = vmatprep.mubr.f32.mxu0 0.0
        %410 = vmatmul.mubr.f32.gmra.mrb[0].mxu0 %v323
        %v411 = vpop.f32.mrb[0].mxu0
        %v412 = vadd.f32 %v343, %v411
        %v413 = vpop.f32.mrb[0].mxu0
        %414 = vmatprep.mubr.f32.mxu0 0.0
        %415 = vmatmul.mubr.f32.gmra.mrb[0].mxu0 %v324
        %v416 = vpop.f32.mrb[0].mxu0
        %v417 = vadd.f32 %v343, %v416
        %v418 = vpop.f32.mrb[0].mxu0
        %419 = vmatprep.mubr.f32.mxu0 0.0
        %420 = vmatmul.mubr.f32.gmra.mrb[0].mxu0 %v325
        %v421 = vpop.f32.mrb[0].mxu0
        %v422 = vadd.f32 %v343, %v421
        %v423 = vpop.f32.mrb[0].mxu0
        %424 = vmatprep.mubr.f32.mxu0 0.0
        %425 = vmatmul.mubr.f32.gmra.mrb[0].mxu0 %v326
        %v426 = vpop.f32.mrb[0].mxu0
        %v427 = vadd.f32 %v343, %v426
        %v428 = vpop.f32.mrb[0].mxu0
        %429 = vmatprep.mubr.f32.mxu0 0.0
        %430 = vmatmul.mubr.f32.gmra.mrb[0].mxu0 %v327
        %v431 = vpop.f32.mrb[0].mxu0
        %v432 = vadd.f32 %v343, %v431
        %v433 = vpop.f32.mrb[0].mxu0
        %434 = vmatprep.mubr.f32.mxu0 0.0
        %435 = vmatmul.mubr.f32.gmra.mrb[0].mxu0 %v328
        %v436 = vpop.f32.mrb[0].mxu0
        %v437 = vadd.f32 %v343, %v436
        %v438 = vpop.f32.mrb[0].mxu0
        %439 = vmatprep.mubr.f32.mxu0 0.0
        %440 = vmatmul.mubr.f32.gmra.mrb[0].mxu0 %v329
        %v441 = vpop.f32.mrb[0].mxu0
        %v442 = vadd.f32 %v343, %v441
        %v443 = vpop.f32.mrb[0].mxu0
        %444 = vmatprep.mubr.f32.mxu0 0.0
        %445 = vmatmul.mubr.f32.gmra.mrb[0].mxu0 %v330
        %v446 = vpop.f32.mrb[0].mxu0
        %v447 = vadd.f32 %v343, %v446
        %v448 = vpop.f32.mrb[0].mxu0
        %449 = vmatprep.mubr.f32.mxu0 0.0
        %450 = vmatmul.mubr.f32.gmra.mrb[0].mxu0 %v331
        %v451 = vpop.f32.mrb[0].mxu0
        %v452 = vadd.f32 %v343, %v451
        %v453 = vpop.f32.mrb[0].mxu0
        %454 = vmatprep.mubr.f32.mxu0 0.0
        %455 = vmatmul.mubr.f32.gmra.mrb[0].mxu0 %v332
        %v456 = vpop.f32.mrb[0].mxu0
        %v457 = vadd.f32 %v343, %v456
        %v458 = vpop.f32.mrb[0].mxu0
        %459 = vmatprep.mubr.f32.mxu0 0.0
        %460 = vmatmul.mubr.f32.gmra.mrb[0].mxu0 %v333
        %v461 = vpop.f32.mrb[0].mxu0
        %v462 = vadd.f32 %v343, %v461
        %v463 = vpop.f32.mrb[0].mxu0
        %464 = vmatprep.mubr.f32.mxu0 0.0
        %465 = vmatmul.mubr.f32.gmra.mrb[0].mxu0 %v334
        %v466 = vpop.f32.mrb[0].mxu0
        %v467 = vadd.f32 %v343, %v466
        %v468 = vpop.f32.mrb[0].mxu0
        %469 = vmatprep.mubr.f32.mxu0 0.0
        %470 = vmatmul.mubr.f32.gmra.mrb[0].mxu0 %v335
        %v471 = vpop.f32.mrb[0].mxu0
        %v472 = vadd.f32 %v343, %v471
        %v473 = vpop.f32.mrb[0].mxu0
        %474 = vmatprep.mubr.f32.mxu0 0.0
        %475 = vmatmul.mubr.f32.gmra.mrb[0].mxu0 %v336
        %v476 = vpop.f32.mrb[0].mxu0
        %v477 = vadd.f32 %v343, %v476
        %v478 = vpop.f32.mrb[0].mxu0
        %479 = vmatprep.mubr.f32.mxu0 0.0
        %480 = vmatmul.mubr.f32.gmra.mrb[0].mxu0 %v337
        %v481 = vpop.f32.mrb[0].mxu0
        %v482 = vadd.f32 %v343, %v481
        %v483 = vpop.f32.mrb[0].mxu0
        %484 = vmatprep.mubr.f32.mxu0 0.0
        %485 = vmatmul.mubr.f32.gmra.mrb[0].mxu0 %v338
        %v486 = vpop.f32.mrb[0].mxu0
        %v487 = vadd.f32 %v343, %v486
        %v488 = vpop.f32.mrb[0].mxu0
        %489 = vdwg.mxu0
        %v490 = vmax.f32 %v412, 0.0
        %v491 = vmax.f32 %v417, 0.0
        %v492 = vmax.f32 %v422, 0.0
        %v493 = vmax.f32 %v427, 0.0
        %v494 = vmax.f32 %v432, 0.0
        %v495 = vmax.f32 %v437, 0.0
        %v496 = vmax.f32 %v442, 0.0
        %v497 = vmax.f32 %v447, 0.0
        %v498 = vmax.f32 %v452, 0.0
        %v499 = vmax.f32 %v457, 0.0
        %v500 = vmax.f32 %v462, 0.0
        %v501 = vmax.f32 %v467, 0.0
        %v502 = vmax.f32 %v472, 0.0
        %v503 = vmax.f32 %v477, 0.0
        %v504 = vmax.f32 %v482, 0.0
        %v505 = vmax.f32 %v487, 0.0
        %v506 = vmin.f32 %v490, 4.0
        %v507 = vmin.f32 %v491, 4.0
        %v508 = vmin.f32 %v492, 4.0
        %v509 = vmin.f32 %v493, 4.0
        %v510 = vmin.f32 %v494, 4.0
        %v511 = vmin.f32 %v495, 4.0
        %v512 = vmin.f32 %v496, 4.0
        %v513 = vmin.f32 %v497, 4.0
        %v514 = vmin.f32 %v498, 4.0
        %v515 = vmin.f32 %v499, 4.0
        %v516 = vmin.f32 %v500, 4.0
        %v517 = vmin.f32 %v501, 4.0
        %v518 = vmin.f32 %v502, 4.0
        %v519 = vmin.f32 %v503, 4.0
        %v520 = vmin.f32 %v504, 4.0
        %v521 = vmin.f32 %v505, 4.0
        %v522 = vmul.f32 %v506, 63.75
        %v523 = vmul.f32 %v507, 63.75
        %v524 = vmul.f32 %v508, 63.75
        %v525 = vmul.f32 %v509, 63.75
        %v526 = vmul.f32 %v510, 63.75
        %v527 = vmul.f32 %v511, 63.75
        %v528 = vmul.f32 %v512, 63.75
        %v529 = vmul.f32 %v513, 63.75
        %v530 = vmul.f32 %v514, 63.75
        %v531 = vmul.f32 %v515, 63.75
        %v532 = vmul.f32 %v516, 63.75
        %v533 = vmul.f32 %v517, 63.75
        %v534 = vmul.f32 %v518, 63.75
        %v535 = vmul.f32 %v519, 63.75
        %v536 = vmul.f32 %v520, 63.75
        %v537 = vmul.f32 %v521, 63.75
        %v538 = vround.ne.pseudo %v522
        %v539 = vround.ne.pseudo %v523
        %v540 = vround.ne.pseudo %v524
        %v541 = vround.ne.pseudo %v525
        %v542 = vround.ne.pseudo %v526
        %v543 = vround.ne.pseudo %v527
        %v544 = vround.ne.pseudo %v528
        %v545 = vround.ne.pseudo %v529
        %v546 = vround.ne.pseudo %v530
        %v547 = vround.ne.pseudo %v531
        %v548 = vround.ne.pseudo %v532
        %v549 = vround.ne.pseudo %v533
        %v550 = vround.ne.pseudo %v534
        %v551 = vround.ne.pseudo %v535
        %v552 = vround.ne.pseudo %v536
        %v553 = vround.ne.pseudo %v537
        %v554 = vmul.f32 %v538, 0.015686275
        %v555 = vmul.f32 %v539, 0.015686275
        %v556 = vmul.f32 %v540, 0.015686275
        %v557 = vmul.f32 %v541, 0.015686275
        %v558 = vmul.f32 %v542, 0.015686275
        %v559 = vmul.f32 %v543, 0.015686275
        %v560 = vmul.f32 %v544, 0.015686275
        %v561 = vmul.f32 %v545, 0.015686275
        %v562 = vmul.f32 %v546, 0.015686275
        %v563 = vmul.f32 %v547, 0.015686275
        %v564 = vmul.f32 %v548, 0.015686275
        %v565 = vmul.f32 %v549, 0.015686275
        %v566 = vmul.f32 %v550, 0.015686275
        %v567 = vmul.f32 %v551, 0.015686275
        %v568 = vmul.f32 %v552, 0.015686275
        %v569 = vmul.f32 %v553, 0.015686275
        %s570 = scalar_lea.vmem [#allocation2], 24
        %571 = vst [vmem:[%s570 + $0x1] sm:$0xff] %v554
        %572 = vst [vmem:[%s570 + $0x9] sm:$0xff] %v555
        %573 = vst [vmem:[%s570 + $0x19] sm:$0xff] %v556
        %574 = vst [vmem:[%s570 + $0x21] sm:$0xff] %v557
        %575 = vst [vmem:[%s570 + $0x31] sm:$0xff] %v558
        %576 = vst [vmem:[%s570 + $0x39] sm:$0xff] %v559
        %577 = vst [vmem:[%s570 + $0x49] sm:$0xff] %v560
        %578 = vst [vmem:[%s570 + $0x51] sm:$0xff] %v561
        %579 = vst [vmem:[%s570 + $0x61] sm:$0xff] %v562
        %580 = vst [vmem:[%s570 + $0x69] sm:$0xff] %v563
        %581 = vst [vmem:[%s570 + $0x79] sm:$0xff] %v564
        %582 = vst [vmem:[%s570 + $0x81] sm:$0xff] %v565
        %583 = vst [vmem:[%s570 + $0x91] sm:$0xff] %v566
        %584 = vst [vmem:[%s570 + $0x99] sm:$0xff] %v567
        %585 = vst [vmem:[%s570 + $0xa9] sm:$0xff] %v568
        %586 = vst [vmem:[%s570 + $0xb1] sm:$0xff] %v569
        %p587 = scmp.gt.s32.totalorder %s28, 0
        // Predicated region
        $region49: #{tpu_custom_call.1} parent=39 // pred_check
          %p588 = pneg %p587
        $region50: #{tpu_custom_call.1} parent=39 // pred_check_branch
          %590 = sbr.rel (%p588) target = $region52
        $region51: #{tpu_custom_call.1} parent=39 // pred_region
          %s591 = ssub.s32 %s273, 1
          %s592 = smul.u32 %s591, 16
          %s593 = scalar_lea.vmem %s241, %s592 [#allocation3]
          %v594 = vld [vmem:[%s593] sm:$0xff]
          %v595 = vld [vmem:[%s593 + $0x8] sm:$0xff]
          %596 = vmatprep.subr.mxu0 0.0
          %597 = vmatpush1.msra.mxu0 %v274
          %598 = vmatprep.subr.mxu0 0.0
          %599 = vmatpush1.msra.mxu0 %v275
          %600 = vmatprep.subr.mxu0 0.0
          %601 = vmatpush1.msra.mxu0 %v276
          %602 = vmatprep.subr.mxu0 0.0
          %603 = vmatpush1.msra.mxu0 %v277
          %604 = vmatprep.subr.mxu0 0.0
          %605 = vmatpush1.msra.mxu0 %v278
          %606 = vmatprep.subr.mxu0 0.0
          %607 = vmatpush1.msra.mxu0 %v279
          %608 = vmatprep.subr.mxu0 0.0
          %609 = vmatpush1.msra.mxu0 %v280
          %610 = vmatprep.subr.mxu0 0.0
          %611 = vmatpush1.msra.mxu0 %v281
          %612 = vmatprep.subr.mxu0 0.0
          %613 = vmatpush1.msra.mxu0 %v282
          %614 = vmatprep.subr.mxu0 0.0
          %615 = vmatpush1.msra.mxu0 %v283
          %616 = vmatprep.subr.mxu0 0.0
          %617 = vmatpush1.msra.mxu0 %v284
          %618 = vmatprep.subr.mxu0 0.0
          %619 = vmatpush1.msra.mxu0 %v285
          %620 = vmatprep.subr.mxu0 0.0
          %621 = vmatpush1.msra.mxu0 %v286
          %622 = vmatprep.subr.mxu0 0.0
          %623 = vmatpush1.msra.mxu0 %v287
          %624 = vmatprep.subr.mxu0 0.0
          %625 = vmatpush1.msra.mxu0 %v288
          %626 = vmatprep.subr.mxu0 0.0
          %627 = vmatpush1.msra.mxu0 %v289
          %628 = vmatprep.subr.mxu0 0.0
          %629 = vmatpush1.msra.mxu0 0.0
          %630 = vmatprep.subr.mxu0 0.0
          %631 = vmatpush1.msra.mxu0 0.0
          %632 = vmatprep.subr.mxu0 0.0
          %633 = vmatpush1.msra.mxu0 0.0
          %634 = vmatprep.subr.mxu0 0.0
          %635 = vmatpush1.msra.mxu0 0.0
          %636 = vmatprep.subr.mxu0 0.0
          %637 = vmatpush1.msra.mxu0 0.0
          %638 = vmatprep.subr.mxu0 0.0
          %639 = vmatpush1.msra.mxu0 0.0
          %640 = vmatprep.subr.mxu0 0.0
          %641 = vmatpush1.msra.mxu0 0.0
          %642 = vmatprep.subr.mxu0 0.0
          %643 = vmatpush1.msra.mxu0 0.0
          %644 = vmatprep.subr.mxu0 0.0
          %645 = vmatpush1.msra.mxu0 0.0
          %646 = vmatprep.subr.mxu0 0.0
          %647 = vmatpush1.msra.mxu0 0.0
          %648 = vmatprep.subr.mxu0 0.0
          %649 = vmatpush1.msra.mxu0 0.0
          %650 = vmatprep.subr.mxu0 0.0
          %651 = vmatpush1.msra.mxu0 0.0
          %652 = vmatprep.subr.mxu0 0.0
          %653 = vmatpush1.msra.mxu0 0.0
          %654 = vmatprep.subr.mxu0 0.0
          %655 = vmatpush1.msra.mxu0 0.0
          %656 = vmatprep.subr.mxu0 0.0
          %657 = vmatpush1.msra.mxu0 0.0
          %658 = vmatprep.subr.mxu0 0.0
          %659 = vmatpush1.msra.mxu0 0.0
          %660 = vmatprep.mubr.f32.mxu0 0.0
          %661 = vmatmul.mubr.f32.gmra.mrb[0].mxu0 %v594
          %v662 = vpop.f32.mrb[0].mxu0
          %v663 = vadd.f32 %v343, %v662
          %v664 = vpop.f32.mrb[0].mxu0
          %665 = vmatprep.mubr.f32.mxu0 0.0
          %666 = vmatmul.mubr.f32.gmra.mrb[0].mxu0 %v595
          %v667 = vpop.f32.mrb[0].mxu0
          %v668 = vadd.f32 %v343, %v667
          %v669 = vpop.f32.mrb[0].mxu0
          %670 = vdwg.mxu0
          %v671 = vmax.f32 %v663, 0.0
          %v672 = vmax.f32 %v668, 0.0
          %v673 = vmin.f32 %v671, 4.0
          %v674 = vmin.f32 %v672, 4.0
          %v675 = vmul.f32 %v673, 63.75
          %v676 = vmul.f32 %v674, 63.75
          %v677 = vround.ne.pseudo %v675
          %v678 = vround.ne.pseudo %v676
          %v679 = vmul.f32 %v677, 0.015686275
          %v680 = vmul.f32 %v678, 0.015686275
          %681 = vst [vmem:[#allocation2 + $0x1] sm:$0xff] %v679
          %682 = vst [vmem:[#allocation2 + $0x9] sm:$0xff] %v680
        $region52: #{tpu_custom_call.1} parent=39 // pred_fallthru
          _
        %p683 = scmp.lt.s32.totalorder %s28, 1
        // Predicated region
        $region53: #{tpu_custom_call.1} parent=39 // pred_check
          %p684 = pneg %p683
        $region54: #{tpu_custom_call.1} parent=39 // pred_check_branch
          %686 = sbr.rel (%p684) target = $region56
        $region55: #{tpu_custom_call.1} parent=39 // pred_region
          %s687 = sadd.s32 %s273, 8
          %s688 = smul.u32 %s687, 16
          %s689 = scalar_lea.vmem %s241, %s688 [#allocation3]
          %v690 = vld [vmem:[%s689] sm:$0xff]
          %v691 = vld [vmem:[%s689 + $0x8] sm:$0xff]
          %692 = vmatprep.subr.mxu0 0.0
          %693 = vmatpush1.msra.mxu0 %v274
          %694 = vmatprep.subr.mxu0 0.0
          %695 = vmatpush1.msra.mxu0 %v275
          %696 = vmatprep.subr.mxu0 0.0
          %697 = vmatpush1.msra.mxu0 %v276
          %698 = vmatprep.subr.mxu0 0.0
          %699 = vmatpush1.msra.mxu0 %v277
          %700 = vmatprep.subr.mxu0 0.0
          %701 = vmatpush1.msra.mxu0 %v278
          %702 = vmatprep.subr.mxu0 0.0
          %703 = vmatpush1.msra.mxu0 %v279
          %704 = vmatprep.subr.mxu0 0.0
          %705 = vmatpush1.msra.mxu0 %v280
          %706 = vmatprep.subr.mxu0 0.0
          %707 = vmatpush1.msra.mxu0 %v281
          %708 = vmatprep.subr.mxu0 0.0
          %709 = vmatpush1.msra.mxu0 %v282
          %710 = vmatprep.subr.mxu0 0.0
          %711 = vmatpush1.msra.mxu0 %v283
          %712 = vmatprep.subr.mxu0 0.0
          %713 = vmatpush1.msra.mxu0 %v284
          %714 = vmatprep.subr.mxu0 0.0
          %715 = vmatpush1.msra.mxu0 %v285
          %716 = vmatprep.subr.mxu0 0.0
          %717 = vmatpush1.msra.mxu0 %v286
          %718 = vmatprep.subr.mxu0 0.0
          %719 = vmatpush1.msra.mxu0 %v287
          %720 = vmatprep.subr.mxu0 0.0
          %721 = vmatpush1.msra.mxu0 %v288
          %722 = vmatprep.subr.mxu0 0.0
          %723 = vmatpush1.msra.mxu0 %v289
          %724 = vmatprep.subr.mxu0 0.0
          %725 = vmatpush1.msra.mxu0 0.0
          %726 = vmatprep.subr.mxu0 0.0
          %727 = vmatpush1.msra.mxu0 0.0
          %728 = vmatprep.subr.mxu0 0.0
          %729 = vmatpush1.msra.mxu0 0.0
          %730 = vmatprep.subr.mxu0 0.0
          %731 = vmatpush1.msra.mxu0 0.0
          %732 = vmatprep.subr.mxu0 0.0
          %733 = vmatpush1.msra.mxu0 0.0
          %734 = vmatprep.subr.mxu0 0.0
          %735 = vmatpush1.msra.mxu0 0.0
          %736 = vmatprep.subr.mxu0 0.0
          %737 = vmatpush1.msra.mxu0 0.0
          %738 = vmatprep.subr.mxu0 0.0
          %739 = vmatpush1.msra.mxu0 0.0
          %740 = vmatprep.subr.mxu0 0.0
          %741 = vmatpush1.msra.mxu0 0.0
          %742 = vmatprep.subr.mxu0 0.0
          %743 = vmatpush1.msra.mxu0 0.0
          %744 = vmatprep.subr.mxu0 0.0
          %745 = vmatpush1.msra.mxu0 0.0
          %746 = vmatprep.subr.mxu0 0.0
          %747 = vmatpush1.msra.mxu0 0.0
          %748 = vmatprep.subr.mxu0 0.0
          %749 = vmatpush1.msra.mxu0 0.0
          %750 = vmatprep.subr.mxu0 0.0
          %751 = vmatpush1.msra.mxu0 0.0
          %752 = vmatprep.subr.mxu0 0.0
          %753 = vmatpush1.msra.mxu0 0.0
          %754 = vmatprep.subr.mxu0 0.0
          %755 = vmatpush1.msra.mxu0 0.0
          %756 = vmatprep.mubr.f32.mxu0 0.0
          %757 = vmatmul.mubr.f32.gmra.mrb[0].mxu0 %v690
          %v758 = vpop.f32.mrb[0].mxu0
          %v759 = vadd.f32 %v343, %v758
          %v760 = vpop.f32.mrb[0].mxu0
          %761 = vmatprep.mubr.f32.mxu0 0.0
          %762 = vmatmul.mubr.f32.gmra.mrb[0].mxu0 %v691
          %v763 = vpop.f32.mrb[0].mxu0
          %v764 = vadd.f32 %v343, %v763
          %v765 = vpop.f32.mrb[0].mxu0
          %766 = vdwg.mxu0
          %v767 = vmax.f32 %v759, 0.0
          %v768 = vmax.f32 %v764, 0.0
          %v769 = vmin.f32 %v767, 4.0
          %v770 = vmin.f32 %v768, 4.0
          %v771 = vmul.f32 %v769, 63.75
          %v772 = vmul.f32 %v770, 63.75
          %v773 = vround.ne.pseudo %v771
          %v774 = vround.ne.pseudo %v772
          %v775 = vmul.f32 %v773, 0.015686275
          %v776 = vmul.f32 %v774, 0.015686275
          %s777 = scalar_lea.vmem [#allocation2], 216
          %778 = vst [vmem:[%s777 + $0x1] sm:$0xff] %v775
          %779 = vst [vmem:[%s777 + $0x9] sm:$0xff] %v776
        $region56: #{tpu_custom_call.1} parent=39 // pred_fallthru
          _
        %v780 = vld [vmem:[#allocation2] sm:$0xff]
        %v781 = vld [vmem:[#allocation2 + $0x8] sm:$0xff]
        %v782 = vld [vmem:[#allocation2 + $0x18] sm:$0xff]
        %v783 = vld [vmem:[#allocation2 + $0x20] sm:$0xff]
        %v784 = vld [vmem:[#allocation2 + $0x30] sm:$0xff]
        %v785 = vld [vmem:[#allocation2 + $0x38] sm:$0xff]
        %v786 = vld [vmem:[#allocation2 + $0x48] sm:$0xff]
        %v787 = vld [vmem:[#allocation2 + $0x50] sm:$0xff]
        %v788 = vld [vmem:[#allocation2 + $0x60] sm:$0xff]
        %v789 = vld [vmem:[#allocation2 + $0x68] sm:$0xff]
        %v790 = vld [vmem:[#allocation2 + $0x78] sm:$0xff]
        %v791 = vld [vmem:[#allocation2 + $0x80] sm:$0xff]
        %v792 = vld [vmem:[#allocation2 + $0x90] sm:$0xff]
        %v793 = vld [vmem:[#allocation2 + $0x98] sm:$0xff]
        %v794 = vld [vmem:[#allocation2 + $0xa8] sm:$0xff]
        %v795 = vld [vmem:[#allocation2 + $0xb0] sm:$0xff]
        %v796 = vld [vmem:[#allocation2 + $0xc0] sm:$0xff]
        %v797 = vld [vmem:[#allocation2 + $0xc8] sm:$0xff]
        %v798 = vld [vmem:[#allocation2 + $0xd8] sm:$0xff]
        %v799 = vld [vmem:[#allocation2 + $0xe0] sm:$0xff]
        %v800 = vld [vmem:[%s3] sm:$0x1]
        %v802 = vlaneseq
        %v803 = vshrl.u32 %v802, 7
        %v804 = vsub.s32 0, %v803
        %v805 = vrot.slane %v800, %v804
        %v807 = vmul.f32 %v780, %v805
        %v808 = vmul.f32 %v781, %v805
        %v809 = vmul.f32 %v782, %v805
        %v810 = vmul.f32 %v783, %v805
        %v811 = vmul.f32 %v784, %v805
        %v812 = vmul.f32 %v785, %v805
        %v813 = vmul.f32 %v786, %v805
        %v814 = vmul.f32 %v787, %v805
        %v815 = vmul.f32 %v788, %v805
        %v816 = vmul.f32 %v789, %v805
        %v817 = vmul.f32 %v790, %v805
        %v818 = vmul.f32 %v791, %v805
        %v819 = vmul.f32 %v792, %v805
        %v820 = vmul.f32 %v793, %v805
        %v821 = vmul.f32 %v794, %v805
        %v822 = vmul.f32 %v795, %v805
        %v823 = vadd.f32 %v807, 0.0
        %v824 = vadd.f32 %v808, 0.0
        %v825 = vadd.f32 %v809, 0.0
        %v826 = vadd.f32 %v810, 0.0
        %v827 = vadd.f32 %v811, 0.0
        %v828 = vadd.f32 %v812, 0.0
        %v829 = vadd.f32 %v813, 0.0
        %v830 = vadd.f32 %v814, 0.0
        %v831 = vadd.f32 %v815, 0.0
        %v832 = vadd.f32 %v816, 0.0
        %v833 = vadd.f32 %v817, 0.0
        %v834 = vadd.f32 %v818, 0.0
        %v835 = vadd.f32 %v819, 0.0
        %v836 = vadd.f32 %v820, 0.0
        %v837 = vadd.f32 %v821, 0.0
        %v838 = vadd.f32 %v822, 0.0
        %s839 = scalar_lea.vmem %s3, 3
        %v840 = vld [vmem:[%s839] sm:$0x1]
        %v842 = vlaneseq
        %v843 = vshrl.u32 %v842, 7
        %v844 = vsub.s32 0, %v843
        %v845 = vrot.slane %v840, %v844
        %v847 = vmul.f32 %v782, %v845
        %v848 = vmul.f32 %v783, %v845
        %v849 = vmul.f32 %v784, %v845
        %v850 = vmul.f32 %v785, %v845
        %v851 = vmul.f32 %v786, %v845
        %v852 = vmul.f32 %v787, %v845
        %v853 = vmul.f32 %v788, %v845
        %v854 = vmul.f32 %v789, %v845
        %v855 = vmul.f32 %v790, %v845
        %v856 = vmul.f32 %v791, %v845
        %v857 = vmul.f32 %v792, %v845
        %v858 = vmul.f32 %v793, %v845
        %v859 = vmul.f32 %v794, %v845
        %v860 = vmul.f32 %v795, %v845
        %v861 = vmul.f32 %v796, %v845
        %v862 = vmul.f32 %v797, %v845
        %v863 = vadd.f32 %v823, %v847
        %v864 = vadd.f32 %v824, %v848
        %v865 = vadd.f32 %v825, %v849
        %v866 = vadd.f32 %v826, %v850
        %v867 = vadd.f32 %v827, %v851
        %v868 = vadd.f32 %v828, %v852
        %v869 = vadd.f32 %v829, %v853
        %v870 = vadd.f32 %v830, %v854
        %v871 = vadd.f32 %v831, %v855
        %v872 = vadd.f32 %v832, %v856
        %v873 = vadd.f32 %v833, %v857
        %v874 = vadd.f32 %v834, %v858
        %v875 = vadd.f32 %v835, %v859
        %v876 = vadd.f32 %v836, %v860
        %v877 = vadd.f32 %v837, %v861
        %v878 = vadd.f32 %v838, %v862
        %s879 = scalar_lea.vmem %s3, 6
        %v880 = vld [vmem:[%s879] sm:$0x1]
        %v882 = vlaneseq
        %v883 = vshrl.u32 %v882, 7
        %v884 = vsub.s32 0, %v883
        %v885 = vrot.slane %v880, %v884
        %v887 = vmul.f32 %v784, %v885
        %v888 = vmul.f32 %v785, %v885
        %v889 = vmul.f32 %v786, %v885
        %v890 = vmul.f32 %v787, %v885
        %v891 = vmul.f32 %v788, %v885
        %v892 = vmul.f32 %v789, %v885
        %v893 = vmul.f32 %v790, %v885
        %v894 = vmul.f32 %v791, %v885
        %v895 = vmul.f32 %v792, %v885
        %v896 = vmul.f32 %v793, %v885
        %v897 = vmul.f32 %v794, %v885
        %v898 = vmul.f32 %v795, %v885
        %v899 = vmul.f32 %v796, %v885
        %v900 = vmul.f32 %v797, %v885
        %v901 = vmul.f32 %v798, %v885
        %v902 = vmul.f32 %v799, %v885
        %v903 = vadd.f32 %v863, %v887
        %v904 = vadd.f32 %v864, %v888
        %v905 = vadd.f32 %v865, %v889
        %v906 = vadd.f32 %v866, %v890
        %v907 = vadd.f32 %v867, %v891
        %v908 = vadd.f32 %v868, %v892
        %v909 = vadd.f32 %v869, %v893
        %v910 = vadd.f32 %v870, %v894
        %v911 = vadd.f32 %v871, %v895
        %v912 = vadd.f32 %v872, %v896
        %v913 = vadd.f32 %v873, %v897
        %v914 = vadd.f32 %v874, %v898
        %v915 = vadd.f32 %v875, %v899
        %v916 = vadd.f32 %v876, %v900
        %v917 = vadd.f32 %v877, %v901
        %v918 = vadd.f32 %v878, %v902
        %v919 = vld [vmem:[#allocation2 + $0x1] sm:$0xff]
        %v920 = vld [vmem:[#allocation2 + $0x9] sm:$0xff]
        %v921 = vld [vmem:[#allocation2 + $0x19] sm:$0xff]
        %v922 = vld [vmem:[#allocation2 + $0x21] sm:$0xff]
        %v923 = vld [vmem:[#allocation2 + $0x31] sm:$0xff]
        %v924 = vld [vmem:[#allocation2 + $0x39] sm:$0xff]
        %v925 = vld [vmem:[#allocation2 + $0x49] sm:$0xff]
        %v926 = vld [vmem:[#allocation2 + $0x51] sm:$0xff]
        %v927 = vld [vmem:[#allocation2 + $0x61] sm:$0xff]
        %v928 = vld [vmem:[#allocation2 + $0x69] sm:$0xff]
        %v929 = vld [vmem:[#allocation2 + $0x79] sm:$0xff]
        %v930 = vld [vmem:[#allocation2 + $0x81] sm:$0xff]
        %v931 = vld [vmem:[#allocation2 + $0x91] sm:$0xff]
        %v932 = vld [vmem:[#allocation2 + $0x99] sm:$0xff]
        %v933 = vld [vmem:[#allocation2 + $0xa9] sm:$0xff]
        %v934 = vld [vmem:[#allocation2 + $0xb1] sm:$0xff]
        %v935 = vld [vmem:[#allocation2 + $0xc1] sm:$0xff]
        %v936 = vld [vmem:[#allocation2 + $0xc9] sm:$0xff]
        %v937 = vld [vmem:[#allocation2 + $0xd9] sm:$0xff]
        %v938 = vld [vmem:[#allocation2 + $0xe1] sm:$0xff]
        %s939 = scalar_lea.vmem %s3, 1
        %v940 = vld [vmem:[%s939] sm:$0x1]
        %v942 = vlaneseq
        %v943 = vshrl.u32 %v942, 7
        %v944 = vsub.s32 0, %v943
        %v945 = vrot.slane %v940, %v944
        %v947 = vmul.f32 %v919, %v945
        %v948 = vmul.f32 %v920, %v945
        %v949 = vmul.f32 %v921, %v945
        %v950 = vmul.f32 %v922, %v945
        %v951 = vmul.f32 %v923, %v945
        %v952 = vmul.f32 %v924, %v945
        %v953 = vmul.f32 %v925, %v945
        %v954 = vmul.f32 %v926, %v945
        %v955 = vmul.f32 %v927, %v945
        %v956 = vmul.f32 %v928, %v945
        %v957 = vmul.f32 %v929, %v945
        %v958 = vmul.f32 %v930, %v945
        %v959 = vmul.f32 %v931, %v945
        %v960 = vmul.f32 %v932, %v945
        %v961 = vmul.f32 %v933, %v945
        %v962 = vmul.f32 %v934, %v945
        %v963 = vadd.f32 %v903, %v947
        %v964 = vadd.f32 %v904, %v948
        %v965 = vadd.f32 %v905, %v949
        %v966 = vadd.f32 %v906, %v950
        %v967 = vadd.f32 %v907, %v951
        %v968 = vadd.f32 %v908, %v952
        %v969 = vadd.f32 %v909, %v953
        %v970 = vadd.f32 %v910, %v954
        %v971 = vadd.f32 %v911, %v955
        %v972 = vadd.f32 %v912, %v956
        %v973 = vadd.f32 %v913, %v957
        %v974 = vadd.f32 %v914, %v958
        %v975 = vadd.f32 %v915, %v959
        %v976 = vadd.f32 %v916, %v960
        %v977 = vadd.f32 %v917, %v961
        %v978 = vadd.f32 %v918, %v962
        %s979 = scalar_lea.vmem %s3, 4
        %v980 = vld [vmem:[%s979] sm:$0x1]
        %v982 = vlaneseq
        %v983 = vshrl.u32 %v982, 7
        %v984 = vsub.s32 0, %v983
        %v985 = vrot.slane %v980, %v984
        %v987 = vmul.f32 %v921, %v985
        %v988 = vmul.f32 %v922, %v985
        %v989 = vmul.f32 %v923, %v985
        %v990 = vmul.f32 %v924, %v985
        %v991 = vmul.f32 %v925, %v985
        %v992 = vmul.f32 %v926, %v985
        %v993 = vmul.f32 %v927, %v985
        %v994 = vmul.f32 %v928, %v985
        %v995 = vmul.f32 %v929, %v985
        %v996 = vmul.f32 %v930, %v985
        %v997 = vmul.f32 %v931, %v985
        %v998 = vmul.f32 %v932, %v985
        %v999 = vmul.f32 %v933, %v985
        %v1000 = vmul.f32 %v934, %v985
        %v1001 = vmul.f32 %v935, %v985
        %v1002 = vmul.f32 %v936, %v985
        %v1003 = vadd.f32 %v963, %v987
        %v1004 = vadd.f32 %v964, %v988
        %v1005 = vadd.f32 %v965, %v989
        %v1006 = vadd.f32 %v966, %v990
        %v1007 = vadd.f32 %v967, %v991
        %v1008 = vadd.f32 %v968, %v992
        %v1009 = vadd.f32 %v969, %v993
        %v1010 = vadd.f32 %v970, %v994
        %v1011 = vadd.f32 %v971, %v995
        %v1012 = vadd.f32 %v972, %v996
        %v1013 = vadd.f32 %v973, %v997
        %v1014 = vadd.f32 %v974, %v998
        %v1015 = vadd.f32 %v975, %v999
        %v1016 = vadd.f32 %v976, %v1000
        %v1017 = vadd.f32 %v977, %v1001
        %v1018 = vadd.f32 %v978, %v1002
        %s1019 = scalar_lea.vmem %s3, 7
        %v1020 = vld [vmem:[%s1019] sm:$0x1]
        %v1022 = vlaneseq
        %v1023 = vshrl.u32 %v1022, 7
        %v1024 = vsub.s32 0, %v1023
        %v1025 = vrot.slane %v1020, %v1024
        %v1027 = vmul.f32 %v923, %v1025
        %v1028 = vmul.f32 %v924, %v1025
        %v1029 = vmul.f32 %v925, %v1025
        %v1030 = vmul.f32 %v926, %v1025
        %v1031 = vmul.f32 %v927, %v1025
        %v1032 = vmul.f32 %v928, %v1025
        %v1033 = vmul.f32 %v929, %v1025
        %v1034 = vmul.f32 %v930, %v1025
        %v1035 = vmul.f32 %v931, %v1025
        %v1036 = vmul.f32 %v932, %v1025
        %v1037 = vmul.f32 %v933, %v1025
        %v1038 = vmul.f32 %v934, %v1025
        %v1039 = vmul.f32 %v935, %v1025
        %v1040 = vmul.f32 %v936, %v1025
        %v1041 = vmul.f32 %v937, %v1025
        %v1042 = vmul.f32 %v938, %v1025
        %v1043 = vadd.f32 %v1003, %v1027
        %v1044 = vadd.f32 %v1004, %v1028
        %v1045 = vadd.f32 %v1005, %v1029
        %v1046 = vadd.f32 %v1006, %v1030
        %v1047 = vadd.f32 %v1007, %v1031
        %v1048 = vadd.f32 %v1008, %v1032
        %v1049 = vadd.f32 %v1009, %v1033
        %v1050 = vadd.f32 %v1010, %v1034
        %v1051 = vadd.f32 %v1011, %v1035
        %v1052 = vadd.f32 %v1012, %v1036
        %v1053 = vadd.f32 %v1013, %v1037
        %v1054 = vadd.f32 %v1014, %v1038
        %v1055 = vadd.f32 %v1015, %v1039
        %v1056 = vadd.f32 %v1016, %v1040
        %v1057 = vadd.f32 %v1017, %v1041
        %v1058 = vadd.f32 %v1018, %v1042
        %v1059 = vld [vmem:[#allocation2 + $0x2] sm:$0xff]
        %v1060 = vld [vmem:[#allocation2 + $0xa] sm:$0xff]
        %v1061 = vld [vmem:[#allocation2 + $0x1a] sm:$0xff]
        %v1062 = vld [vmem:[#allocation2 + $0x22] sm:$0xff]
        %v1063 = vld [vmem:[#allocation2 + $0x32] sm:$0xff]
        %v1064 = vld [vmem:[#allocation2 + $0x3a] sm:$0xff]
        %v1065 = vld [vmem:[#allocation2 + $0x4a] sm:$0xff]
        %v1066 = vld [vmem:[#allocation2 + $0x52] sm:$0xff]
        %v1067 = vld [vmem:[#allocation2 + $0x62] sm:$0xff]
        %v1068 = vld [vmem:[#allocation2 + $0x6a] sm:$0xff]
        %v1069 = vld [vmem:[#allocation2 + $0x7a] sm:$0xff]
        %v1070 = vld [vmem:[#allocation2 + $0x82] sm:$0xff]
        %v1071 = vld [vmem:[#allocation2 + $0x92] sm:$0xff]
        %v1072 = vld [vmem:[#allocation2 + $0x9a] sm:$0xff]
        %v1073 = vld [vmem:[#allocation2 + $0xaa] sm:$0xff]
        %v1074 = vld [vmem:[#allocation2 + $0xb2] sm:$0xff]
        %v1075 = vld [vmem:[#allocation2 + $0xc2] sm:$0xff]
        %v1076 = vld [vmem:[#allocation2 + $0xca] sm:$0xff]
        %v1077 = vld [vmem:[#allocation2 + $0xda] sm:$0xff]
        %v1078 = vld [vmem:[#allocation2 + $0xe2] sm:$0xff]
        %s1079 = scalar_lea.vmem %s3, 2
        %v1080 = vld [vmem:[%s1079] sm:$0x1]
        %v1082 = vlaneseq
        %v1083 = vshrl.u32 %v1082, 7
        %v1084 = vsub.s32 0, %v1083
        %v1085 = vrot.slane %v1080, %v1084
        %v1087 = vmul.f32 %v1059, %v1085
        %v1088 = vmul.f32 %v1060, %v1085
        %v1089 = vmul.f32 %v1061, %v1085
        %v1090 = vmul.f32 %v1062, %v1085
        %v1091 = vmul.f32 %v1063, %v1085
        %v1092 = vmul.f32 %v1064, %v1085
        %v1093 = vmul.f32 %v1065, %v1085
        %v1094 = vmul.f32 %v1066, %v1085
        %v1095 = vmul.f32 %v1067, %v1085
        %v1096 = vmul.f32 %v1068, %v1085
        %v1097 = vmul.f32 %v1069, %v1085
        %v1098 = vmul.f32 %v1070, %v1085
        %v1099 = vmul.f32 %v1071, %v1085
        %v1100 = vmul.f32 %v1072, %v1085
        %v1101 = vmul.f32 %v1073, %v1085
        %v1102 = vmul.f32 %v1074, %v1085
        %v1103 = vadd.f32 %v1043, %v1087
        %v1104 = vadd.f32 %v1044, %v1088
        %v1105 = vadd.f32 %v1045, %v1089
        %v1106 = vadd.f32 %v1046, %v1090
        %v1107 = vadd.f32 %v1047, %v1091
        %v1108 = vadd.f32 %v1048, %v1092
        %v1109 = vadd.f32 %v1049, %v1093
        %v1110 = vadd.f32 %v1050, %v1094
        %v1111 = vadd.f32 %v1051, %v1095
        %v1112 = vadd.f32 %v1052, %v1096
        %v1113 = vadd.f32 %v1053, %v1097
        %v1114 = vadd.f32 %v1054, %v1098
        %v1115 = vadd.f32 %v1055, %v1099
        %v1116 = vadd.f32 %v1056, %v1100
        %v1117 = vadd.f32 %v1057, %v1101
        %v1118 = vadd.f32 %v1058, %v1102
        %s1119 = scalar_lea.vmem %s3, 5
        %v1120 = vld [vmem:[%s1119] sm:$0x1]
        %v1122 = vlaneseq
        %v1123 = vshrl.u32 %v1122, 7
        %v1124 = vsub.s32 0, %v1123
        %v1125 = vrot.slane %v1120, %v1124
        %v1127 = vmul.f32 %v1061, %v1125
        %v1128 = vmul.f32 %v1062, %v1125
        %v1129 = vmul.f32 %v1063, %v1125
        %v1130 = vmul.f32 %v1064, %v1125
        %v1131 = vmul.f32 %v1065, %v1125
        %v1132 = vmul.f32 %v1066, %v1125
        %v1133 = vmul.f32 %v1067, %v1125
        %v1134 = vmul.f32 %v1068, %v1125
        %v1135 = vmul.f32 %v1069, %v1125
        %v1136 = vmul.f32 %v1070, %v1125
        %v1137 = vmul.f32 %v1071, %v1125
        %v1138 = vmul.f32 %v1072, %v1125
        %v1139 = vmul.f32 %v1073, %v1125
        %v1140 = vmul.f32 %v1074, %v1125
        %v1141 = vmul.f32 %v1075, %v1125
        %v1142 = vmul.f32 %v1076, %v1125
        %v1143 = vadd.f32 %v1103, %v1127
        %v1144 = vadd.f32 %v1104, %v1128
        %v1145 = vadd.f32 %v1105, %v1129
        %v1146 = vadd.f32 %v1106, %v1130
        %v1147 = vadd.f32 %v1107, %v1131
        %v1148 = vadd.f32 %v1108, %v1132
        %v1149 = vadd.f32 %v1109, %v1133
        %v1150 = vadd.f32 %v1110, %v1134
        %v1151 = vadd.f32 %v1111, %v1135
        %v1152 = vadd.f32 %v1112, %v1136
        %v1153 = vadd.f32 %v1113, %v1137
        %v1154 = vadd.f32 %v1114, %v1138
        %v1155 = vadd.f32 %v1115, %v1139
        %v1156 = vadd.f32 %v1116, %v1140
        %v1157 = vadd.f32 %v1117, %v1141
        %v1158 = vadd.f32 %v1118, %v1142
        %s1159 = scalar_lea.vmem %s3, 8
        %v1160 = vld [vmem:[%s1159] sm:$0x1]
        %v1162 = vlaneseq
        %v1163 = vshrl.u32 %v1162, 7
        %v1164 = vsub.s32 0, %v1163
        %v1165 = vrot.slane %v1160, %v1164
        %v1167 = vmul.f32 %v1063, %v1165
        %v1168 = vmul.f32 %v1064, %v1165
        %v1169 = vmul.f32 %v1065, %v1165
        %v1170 = vmul.f32 %v1066, %v1165
        %v1171 = vmul.f32 %v1067, %v1165
        %v1172 = vmul.f32 %v1068, %v1165
        %v1173 = vmul.f32 %v1069, %v1165
        %v1174 = vmul.f32 %v1070, %v1165
        %v1175 = vmul.f32 %v1071, %v1165
        %v1176 = vmul.f32 %v1072, %v1165
        %v1177 = vmul.f32 %v1073, %v1165
        %v1178 = vmul.f32 %v1074, %v1165
        %v1179 = vmul.f32 %v1075, %v1165
        %v1180 = vmul.f32 %v1076, %v1165
        %v1181 = vmul.f32 %v1077, %v1165
        %v1182 = vmul.f32 %v1078, %v1165
        %v1183 = vadd.f32 %v1143, %v1167
        %v1184 = vadd.f32 %v1144, %v1168
        %v1185 = vadd.f32 %v1145, %v1169
        %v1186 = vadd.f32 %v1146, %v1170
        %v1187 = vadd.f32 %v1147, %v1171
        %v1188 = vadd.f32 %v1148, %v1172
        %v1189 = vadd.f32 %v1149, %v1173
        %v1190 = vadd.f32 %v1150, %v1174
        %v1191 = vadd.f32 %v1151, %v1175
        %v1192 = vadd.f32 %v1152, %v1176
        %v1193 = vadd.f32 %v1153, %v1177
        %v1194 = vadd.f32 %v1154, %v1178
        %v1195 = vadd.f32 %v1155, %v1179
        %v1196 = vadd.f32 %v1156, %v1180
        %v1197 = vadd.f32 %v1157, %v1181
        %v1198 = vadd.f32 %v1158, %v1182
        %v1199 = vld [vmem:[%s4] sm:$0x1]
        %v1201 = vlaneseq
        %v1202 = vshrl.u32 %v1201, 7
        %v1203 = vsub.s32 0, %v1202
        %v1204 = vrot.slane %v1199, %v1203
        %v1206 = vadd.f32 %v1183, %v1204
        %v1207 = vadd.f32 %v1184, %v1204
        %v1208 = vadd.f32 %v1185, %v1204
        %v1209 = vadd.f32 %v1186, %v1204
        %v1210 = vadd.f32 %v1187, %v1204
        %v1211 = vadd.f32 %v1188, %v1204
        %v1212 = vadd.f32 %v1189, %v1204
        %v1213 = vadd.f32 %v1190, %v1204
        %v1214 = vadd.f32 %v1191, %v1204
        %v1215 = vadd.f32 %v1192, %v1204
        %v1216 = vadd.f32 %v1193, %v1204
        %v1217 = vadd.f32 %v1194, %v1204
        %v1218 = vadd.f32 %v1195, %v1204
        %v1219 = vadd.f32 %v1196, %v1204
        %v1220 = vadd.f32 %v1197, %v1204
        %v1221 = vadd.f32 %v1198, %v1204
        %v1222 = vmax.f32 %v1206, 0.0
        %v1223 = vmax.f32 %v1207, 0.0
        %v1224 = vmax.f32 %v1208, 0.0
        %v1225 = vmax.f32 %v1209, 0.0
        %v1226 = vmax.f32 %v1210, 0.0
        %v1227 = vmax.f32 %v1211, 0.0
        %v1228 = vmax.f32 %v1212, 0.0
        %v1229 = vmax.f32 %v1213, 0.0
        %v1230 = vmax.f32 %v1214, 0.0
        %v1231 = vmax.f32 %v1215, 0.0
        %v1232 = vmax.f32 %v1216, 0.0
        %v1233 = vmax.f32 %v1217, 0.0
        %v1234 = vmax.f32 %v1218, 0.0
        %v1235 = vmax.f32 %v1219, 0.0
        %v1236 = vmax.f32 %v1220, 0.0
        %v1237 = vmax.f32 %v1221, 0.0
        %v1238 = vmin.f32 %v1222, 4.0
        %v1239 = vmin.f32 %v1223, 4.0
        %v1240 = vmin.f32 %v1224, 4.0
        %v1241 = vmin.f32 %v1225, 4.0
        %v1242 = vmin.f32 %v1226, 4.0
        %v1243 = vmin.f32 %v1227, 4.0
        %v1244 = vmin.f32 %v1228, 4.0
        %v1245 = vmin.f32 %v1229, 4.0
        %v1246 = vmin.f32 %v1230, 4.0
        %v1247 = vmin.f32 %v1231, 4.0
        %v1248 = vmin.f32 %v1232, 4.0
        %v1249 = vmin.f32 %v1233, 4.0
        %v1250 = vmin.f32 %v1234, 4.0
        %v1251 = vmin.f32 %v1235, 4.0
        %v1252 = vmin.f32 %v1236, 4.0
        %v1253 = vmin.f32 %v1237, 4.0
        %v1254 = vmul.f32 %v1238, 63.75
        %v1255 = vmul.f32 %v1239, 63.75
        %v1256 = vmul.f32 %v1240, 63.75
        %v1257 = vmul.f32 %v1241, 63.75
        %v1258 = vmul.f32 %v1242, 63.75
        %v1259 = vmul.f32 %v1243, 63.75
        %v1260 = vmul.f32 %v1244, 63.75
        %v1261 = vmul.f32 %v1245, 63.75
        %v1262 = vmul.f32 %v1246, 63.75
        %v1263 = vmul.f32 %v1247, 63.75
        %v1264 = vmul.f32 %v1248, 63.75
        %v1265 = vmul.f32 %v1249, 63.75
        %v1266 = vmul.f32 %v1250, 63.75
        %v1267 = vmul.f32 %v1251, 63.75
        %v1268 = vmul.f32 %v1252, 63.75
        %v1269 = vmul.f32 %v1253, 63.75
        %v1270 = vround.ne.pseudo %v1254
        %v1271 = vround.ne.pseudo %v1255
        %v1272 = vround.ne.pseudo %v1256
        %v1273 = vround.ne.pseudo %v1257
        %v1274 = vround.ne.pseudo %v1258
        %v1275 = vround.ne.pseudo %v1259
        %v1276 = vround.ne.pseudo %v1260
        %v1277 = vround.ne.pseudo %v1261
        %v1278 = vround.ne.pseudo %v1262
        %v1279 = vround.ne.pseudo %v1263
        %v1280 = vround.ne.pseudo %v1264
        %v1281 = vround.ne.pseudo %v1265
        %v1282 = vround.ne.pseudo %v1266
        %v1283 = vround.ne.pseudo %v1267
        %v1284 = vround.ne.pseudo %v1268
        %v1285 = vround.ne.pseudo %v1269
        %v1286 = vmul.f32 %v1270, 0.015686275
        %v1287 = vmul.f32 %v1271, 0.015686275
        %v1288 = vmul.f32 %v1272, 0.015686275
        %v1289 = vmul.f32 %v1273, 0.015686275
        %v1290 = vmul.f32 %v1274, 0.015686275
        %v1291 = vmul.f32 %v1275, 0.015686275
        %v1292 = vmul.f32 %v1276, 0.015686275
        %v1293 = vmul.f32 %v1277, 0.015686275
        %v1294 = vmul.f32 %v1278, 0.015686275
        %v1295 = vmul.f32 %v1279, 0.015686275
        %v1296 = vmul.f32 %v1280, 0.015686275
        %v1297 = vmul.f32 %v1281, 0.015686275
        %v1298 = vmul.f32 %v1282, 0.015686275
        %v1299 = vmul.f32 %v1283, 0.015686275
        %v1300 = vmul.f32 %v1284, 0.015686275
        %v1301 = vmul.f32 %v1285, 0.015686275
        %v1302 = vld [vmem:[%s322] sm:$0xff]
        %v1303 = vld [vmem:[%s322 + $0x8] sm:$0xff]
        %v1304 = vld [vmem:[%s322 + $0x10] sm:$0xff]
        %v1305 = vld [vmem:[%s322 + $0x18] sm:$0xff]
        %v1306 = vld [vmem:[%s322 + $0x20] sm:$0xff]
        %v1307 = vld [vmem:[%s322 + $0x28] sm:$0xff]
        %v1308 = vld [vmem:[%s322 + $0x30] sm:$0xff]
        %v1309 = vld [vmem:[%s322 + $0x38] sm:$0xff]
        %v1310 = vld [vmem:[%s322 + $0x40] sm:$0xff]
        %v1311 = vld [vmem:[%s322 + $0x48] sm:$0xff]
        %v1312 = vld [vmem:[%s322 + $0x50] sm:$0xff]
        %v1313 = vld [vmem:[%s322 + $0x58] sm:$0xff]
        %v1314 = vld [vmem:[%s322 + $0x60] sm:$0xff]
        %v1315 = vld [vmem:[%s322 + $0x68] sm:$0xff]
        %v1316 = vld [vmem:[%s322 + $0x70] sm:$0xff]
        %v1317 = vld [vmem:[%s322 + $0x78] sm:$0xff]
        %v1318 = vadd.f32 %v1286, %v1302
        %v1319 = vadd.f32 %v1287, %v1303
        %v1320 = vadd.f32 %v1288, %v1304
        %v1321 = vadd.f32 %v1289, %v1305
        %v1322 = vadd.f32 %v1290, %v1306
        %v1323 = vadd.f32 %v1291, %v1307
        %v1324 = vadd.f32 %v1292, %v1308
        %v1325 = vadd.f32 %v1293, %v1309
        %v1326 = vadd.f32 %v1294, %v1310
        %v1327 = vadd.f32 %v1295, %v1311
        %v1328 = vadd.f32 %v1296, %v1312
        %v1329 = vadd.f32 %v1297, %v1313
        %v1330 = vadd.f32 %v1298, %v1314
        %v1331 = vadd.f32 %v1299, %v1315
        %v1332 = vadd.f32 %v1300, %v1316
        %v1333 = vadd.f32 %v1301, %v1317
        %v1334 = vmul.f32 %v1318, 0.5
        %v1335 = vmul.f32 %v1319, 0.5
        %v1336 = vmul.f32 %v1320, 0.5
        %v1337 = vmul.f32 %v1321, 0.5
        %v1338 = vmul.f32 %v1322, 0.5
        %v1339 = vmul.f32 %v1323, 0.5
        %v1340 = vmul.f32 %v1324, 0.5
        %v1341 = vmul.f32 %v1325, 0.5
        %v1342 = vmul.f32 %v1326, 0.5
        %v1343 = vmul.f32 %v1327, 0.5
        %v1344 = vmul.f32 %v1328, 0.5
        %v1345 = vmul.f32 %v1329, 0.5
        %v1346 = vmul.f32 %v1330, 0.5
        %v1347 = vmul.f32 %v1331, 0.5
        %v1348 = vmul.f32 %v1332, 0.5
        %v1349 = vmul.f32 %v1333, 0.5
        %v1350 = vmul.f32 %v1334, 63.75
        %v1351 = vmul.f32 %v1335, 63.75
        %v1352 = vmul.f32 %v1336, 63.75
        %v1353 = vmul.f32 %v1337, 63.75
        %v1354 = vmul.f32 %v1338, 63.75
        %v1355 = vmul.f32 %v1339, 63.75
        %v1356 = vmul.f32 %v1340, 63.75
        %v1357 = vmul.f32 %v1341, 63.75
        %v1358 = vmul.f32 %v1342, 63.75
        %v1359 = vmul.f32 %v1343, 63.75
        %v1360 = vmul.f32 %v1344, 63.75
        %v1361 = vmul.f32 %v1345, 63.75
        %v1362 = vmul.f32 %v1346, 63.75
        %v1363 = vmul.f32 %v1347, 63.75
        %v1364 = vmul.f32 %v1348, 63.75
        %v1365 = vmul.f32 %v1349, 63.75
        %v1366 = vfloor.f32 %v1350
        %v1367 = vfloor.f32 %v1351
        %v1368 = vfloor.f32 %v1352
        %v1369 = vfloor.f32 %v1353
        %v1370 = vfloor.f32 %v1354
        %v1371 = vfloor.f32 %v1355
        %v1372 = vfloor.f32 %v1356
        %v1373 = vfloor.f32 %v1357
        %v1374 = vfloor.f32 %v1358
        %v1375 = vfloor.f32 %v1359
        %v1376 = vfloor.f32 %v1360
        %v1377 = vfloor.f32 %v1361
        %v1378 = vfloor.f32 %v1362
        %v1379 = vfloor.f32 %v1363
        %v1380 = vfloor.f32 %v1364
        %v1381 = vfloor.f32 %v1365
        %v1382 = vmul.f32 %v1366, 0.015686275
        %v1383 = vmul.f32 %v1367, 0.015686275
        %v1384 = vmul.f32 %v1368, 0.015686275
        %v1385 = vmul.f32 %v1369, 0.015686275
        %v1386 = vmul.f32 %v1370, 0.015686275
        %v1387 = vmul.f32 %v1371, 0.015686275
        %v1388 = vmul.f32 %v1372, 0.015686275
        %v1389 = vmul.f32 %v1373, 0.015686275
        %v1390 = vmul.f32 %v1374, 0.015686275
        %v1391 = vmul.f32 %v1375, 0.015686275
        %v1392 = vmul.f32 %v1376, 0.015686275
        %v1393 = vmul.f32 %v1377, 0.015686275
        %v1394 = vmul.f32 %v1378, 0.015686275
        %v1395 = vmul.f32 %v1379, 0.015686275
        %v1396 = vmul.f32 %v1380, 0.015686275
        %v1397 = vmul.f32 %v1381, 0.015686275
        %1398 = vst [vmem:[%s271] sm:$0xff] %v1382
        %1399 = vst [vmem:[%s271 + $0x8] sm:$0xff] %v1383
        %1400 = vst [vmem:[%s271 + $0x10] sm:$0xff] %v1384
        %1401 = vst [vmem:[%s271 + $0x18] sm:$0xff] %v1385
        %1402 = vst [vmem:[%s271 + $0x20] sm:$0xff] %v1386
        %1403 = vst [vmem:[%s271 + $0x28] sm:$0xff] %v1387
        %1404 = vst [vmem:[%s271 + $0x30] sm:$0xff] %v1388
        %1405 = vst [vmem:[%s271 + $0x38] sm:$0xff] %v1389
        %1406 = vst [vmem:[%s271 + $0x40] sm:$0xff] %v1390
        %1407 = vst [vmem:[%s271 + $0x48] sm:$0xff] %v1391
        %1408 = vst [vmem:[%s271 + $0x50] sm:$0xff] %v1392
        %1409 = vst [vmem:[%s271 + $0x58] sm:$0xff] %v1393
        %1410 = vst [vmem:[%s271 + $0x60] sm:$0xff] %v1394
        %1411 = vst [vmem:[%s271 + $0x68] sm:$0xff] %v1395
        %1412 = vst [vmem:[%s271 + $0x70] sm:$0xff] %v1396
        %1413 = vst [vmem:[%s271 + $0x78] sm:$0xff] %v1397
        %s1414 = sand.u32 %s155, 1
        %s1415 = scalar_lea.sflag [#allocation5], %s1414
        %s1416 = sand.u32 %s155, 1
        %s1417 = smul.addr %s1416, 128
        %s1418 = scalar_lea.vmem [#allocation8], %s1417
        // Predicated region
        $region57: #{tpu_custom_call.1} parent=39 // pred_check
          %p1419 = pneg %p165
        $region58: #{tpu_custom_call.1} parent=39 // pred_check_branch
          %1421 = sbr.rel (%p1419) target = $region60
        $region59: #{tpu_custom_call.1} parent=39 // pred_region
          %s1422 = smul.u32 8, %s28
          %s1424 = ssub.s32 2048, 2048
          %1425 = vsyncadd %s1415, %s1424
          %s1426 = smul.addr %s1422, 2
          %s1427 = smul.addr %s27, 32
          %s1428 = sadd.s32 %s1426, %s1427
          %s1429 = smul.addr %s1428, 128
          %s1430 = scalar_lea.hbm %s5, %s1429
          %s1431 = sshll.u32 %s1418, 4
          %s1432 = int_to_ptr.vmem [resolvable:$true] %s1431
          %1437 = dma.vmem_to_hbm [thread:$0]  %s1432, 2048, %s1430, %s1415, 128, 128, 8
        $region60: #{tpu_custom_call.1} parent=39 // pred_fallthru
          _
      $region40: #{tpu_custom_call.1} parent=5 // pred_fallthru
        _
      %p1438 = scmp.le.s32.totalorder 2, %s18
      // Predicated region
      $region61: #{tpu_custom_call.1} parent=5 // pred_check
        %p1439 = pneg %p1438
      $region62: #{tpu_custom_call.1} parent=5 // pred_check_branch
        %1441 = sbr.rel (%p1439) target = $region64
      $region63: #{tpu_custom_call.1} parent=5 // pred_region
        %s1442 = ssub.s32 %s18, 2
        // Predicated region
        $region65: #{tpu_custom_call.1} parent=63 // pred_check
          %p1443 = pneg %p171
        $region66: #{tpu_custom_call.1} parent=63 // pred_check_branch
          %1445 = sbr.rel (%p1443) target = $region68
        $region67: #{tpu_custom_call.1} parent=63 // pred_region
          %s1446 = sand.u32 %s156, 1
          %s1447 = scalar_lea.sflag [#allocation5], %s1446
          %s1448 = sand.u32 %s156, 1
          %s1449 = smul.addr %s1448, 128
          %s1450 = scalar_lea.vmem [#allocation8], %s1449
          %1451 = dma.done %s1447, 2048
        $region68: #{tpu_custom_call.1} parent=63 // pred_fallthru
          _
      $region64: #{tpu_custom_call.1} parent=5 // pred_fallthru
        _
    $region6: #{tpu_custom_call.1} parent=1 // loop_footer
      %s22 = sadd.s32 1, %s18
    $region7: #{tpu_custom_call.1} parent=1 // loop_footer_branch
      %17 = sbr.rel target = $region3
    $region8: #{tpu_custom_call.1} parent=1 // loop_exit
      _
    %1452 = vsyncpa [#allocation4], 1
    %s1453 = scalar_lea.sflag [#allocation4], 1
    %1454 = vsyncpa %s1453, 1
    %1455 = vsyncpa [#allocation7], 1
    %1456 = vsyncpa [#allocation5], 1
    %s1457 = scalar_lea.sflag [#allocation5], 1
    %1458 = vsyncpa %s1457, 1

</llo_original>
